<compile_context>
chip_gen: v7x
topology: tpu7x:2x2x1
jax: 0.10.0
libtpu: 0.0.40
codegen_flags: <defaults>
</compile_context>

<pallas_src>
import functools
import math

import jax
import jax.numpy as jnp
from jax.experimental import pallas as pl
from jax.experimental.pallas import tpu as pltpu

# ---- small synthetic BERT config (structure of bert-base-uncased, tiny sizes) ----
VOCAB = 128
HIDDEN = 128            # lane-dense (multiple of 128)
LAYERS = 2
HEADS = 4
HEAD_DIM = HIDDEN // HEADS
INTERMEDIATE = 4 * HIDDEN    # 512, lane-dense
MAX_POS = 16
TYPE_VOCAB = 2
LN_EPS = 1e-12


@functools.lru_cache(maxsize=None)
def _vmem_limit_bytes():
    """Per-generation scoped-VMEM budget with headroom (v7x: 64 MiB physical)."""
    try:
        cap = pltpu.get_tpu_info().vmem_capacity_bytes
        return int(min(cap * 5 // 8, 96 * 1024 * 1024))
    except Exception:
        return 32 * 1024 * 1024


def _ln(y, g, b):
    """LayerNorm over last axis, f32 math (BERT eps=1e-12)."""
    mu = jnp.mean(y, axis=-1, keepdims=True)
    var = jnp.mean(jnp.square(y - mu), axis=-1, keepdims=True)
    return (y - mu) * jax.lax.rsqrt(var + LN_EPS) * g + b


def _gelu(y):
    # TODO(synk): HF BERT uses exact erf-GELU; tanh approximation used here.
    return 0.5 * y * (1.0 + jnp.tanh(0.7978845608028654 * (y + 0.044715 * y * y * y)))


# ---------------- fused per-layer encoder kernel ----------------

def _encoder_layer_kernel(x_ref, mask_ref, wqkv_ref, bqkv_ref, wo_ref, bo_ref,
                          ln1g_ref, ln1b_ref, w1_ref, b1_ref, w2_ref, b2_ref,
                          ln2g_ref, ln2b_ref, lnin_g_ref, lnin_b_ref,
                          o_ref, *, input_ln):
    """One whole encoder layer for one batch row:
    [optional embedding LN] -> QKV (one full-width matmul) -> per-head softmax
    attention -> out-proj + residual + LN1 -> FFN(GELU) + residual + LN2."""
    x = x_ref[0]                                     # (S, H) f32
    if input_ln:                                     # embedding LayerNorm fused into layer 0
        x = _ln(x, lnin_g_ref[...], lnin_b_ref[...])
    xb = x.astype(jnp.bfloat16)

    # Full-width fused QKV projection.  1/sqrt(head_dim) is folded into the q
    # columns of wqkv/bqkv at init time, so no runtime scale multiply.
    qkv = jnp.dot(xb, wqkv_ref[...], preferred_element_type=jnp.float32) + bqkv_ref[...]  # (S, 3H)

    mask = mask_ref[0]                               # (1, S) additive mask, broadcast over rows

    ctx_heads = []
    for h in range(HEADS):                           # statically unrolled
        lo = h * HEAD_DIM
        qh = qkv[:, lo:lo + HEAD_DIM].astype(jnp.bfloat16)
        kh = qkv[:, HIDDEN + lo:HIDDEN + lo + HEAD_DIM].astype(jnp.bfloat16)
        vh = qkv[:, 2 * HIDDEN + lo:2 * HIDDEN + lo + HEAD_DIM].astype(jnp.bfloat16)

        s = jnp.dot(qh, kh.T, preferred_element_type=jnp.float32) + mask      # (S, S) f32
        s = s - jnp.max(s, axis=-1, keepdims=True)                            # stable softmax
        p = jnp.exp(s)
        p = p * pl.reciprocal(jnp.sum(p, axis=-1, keepdims=True), approx=True)
        ctx_heads.append(jnp.dot(p.astype(jnp.bfloat16), vh,
                                 preferred_element_type=jnp.float32))         # (S, D)
    ctx = jnp.concatenate(ctx_heads, axis=-1)        # (S, H) f32, lane-dense

    attn = jnp.dot(ctx.astype(jnp.bfloat16), wo_ref[...],
                   preferred_element_type=jnp.float32) + bo_ref[...]
    # attention dropout / hidden dropout -> identity (inference semantics)
    y1 = _ln(attn + x, ln1g_ref[...], ln1b_ref[...])

    hmid = jnp.dot(y1.astype(jnp.bfloat16), w1_ref[...],
                   preferred_element_type=jnp.float32) + b1_ref[...]
    hmid = _gelu(hmid)
    y2 = jnp.dot(hmid.astype(jnp.bfloat16), w2_ref[...],
                 preferred_element_type=jnp.float32) + b2_ref[...]
    o_ref[0] = _ln(y2 + y1, ln2g_ref[...], ln2b_ref[...])


def encoder_layer(x, ext_mask, lyr, lnin_g, lnin_b, *, input_ln):
    B, S, H = x.shape
    I = lyr["w1"].shape[1]

    cost = pl.CostEstimate(
        flops=B * (8 * S * H * H + 4 * S * S * H + 4 * S * H * I),
        transcendentals=B * (S * S * HEADS + S * I + S * HEADS + 3 * S),
        bytes_accessed=(2 * B * S * H * 4          # x in + out (f32)
                        + B * S * 4                # additive mask
                        + (4 * H * H + 2 * H * I) * 2   # bf16 weights
                        + (5 * H + 3 * H + I + 2 * H) * 4),  # biases + LN params
    )

    def const2d(shape):
        return pl.BlockSpec(shape, lambda b: (0, 0))

    return pl.pallas_call(
        functools.partial(_encoder_layer_kernel, input_ln=input_ln),
        out_shape=jax.ShapeDtypeStruct((B, S, H), jnp.float32),
        grid=(B,),
        in_specs=[
            pl.BlockSpec((1, S, H), lambda b: (b, 0, 0)),     # x
            pl.BlockSpec((1, 1, S), lambda b: (b, 0, 0)),     # additive mask
            const2d((H, 3 * H)), const2d((1, 3 * H)),         # wqkv, bqkv
            const2d((H, H)), const2d((1, H)),                 # wo, bo
            const2d((1, H)), const2d((1, H)),                 # ln1 gamma, beta
            const2d((H, I)), const2d((1, I)),                 # w1, b1
            const2d((I, H)), const2d((1, H)),                 # w2, b2
            const2d((1, H)), const2d((1, H)),                 # ln2 gamma, beta
            const2d((1, H)), const2d((1, H)),                 # embedding LN gamma, beta
        ],
        out_specs=pl.BlockSpec((1, S, H), lambda b: (b, 0, 0)),
        compiler_params=pltpu.CompilerParams(
            dimension_semantics=("parallel",),
            vmem_limit_bytes=_vmem_limit_bytes()),
        cost_estimate=cost,
    )(x, ext_mask, lyr["wqkv"], lyr["bqkv"], lyr["wo"], lyr["bo"],
      lyr["ln1_g"], lyr["ln1_b"], lyr["w1"], lyr["b1"], lyr["w2"], lyr["b2"],
      lyr["ln2_g"], lyr["ln2_b"], lnin_g, lnin_b)


# ---------------- fused pooler + Linear(H, 1) head ----------------

def _head_kernel(cls_ref, pw_ref, pb_ref, ow_ref, ob_ref, o_ref):
    """pooler: tanh(CLS @ W + b); dropout p=0.4 -> identity; Linear(H,1) as a
    VPU multiply + lane reduce (no dead MXU columns, no padded output)."""
    pooled = jnp.tanh(jnp.dot(cls_ref[...].astype(jnp.bfloat16), pw_ref[...],
                              preferred_element_type=jnp.float32) + pb_ref[...])
    # TODO(synk): training-mode stochastic dropout (p=0.4) not implemented.
    o_ref[...] = jnp.sum(pooled * ow_ref[...], axis=-1, keepdims=True) + ob_ref[...]


def pooler_head(cls, params):
    B, H = cls.shape
    return pl.pallas_call(
        _head_kernel,
        out_shape=jax.ShapeDtypeStruct((B, 1), jnp.float32),
        grid=(1,),
        in_specs=[
            pl.BlockSpec((B, H), lambda i: (0, 0)),
            pl.BlockSpec((H, H), lambda i: (0, 0)),
            pl.BlockSpec((1, H), lambda i: (0, 0)),
            pl.BlockSpec((1, H), lambda i: (0, 0)),
            pl.BlockSpec((1, 1), lambda i: (0, 0)),
        ],
        out_specs=pl.BlockSpec((B, 1), lambda i: (0, 0)),
        compiler_params=pltpu.CompilerParams(
            vmem_limit_bytes=_vmem_limit_bytes()),
    )(cls, params["pool_w"], params["pool_b"], params["out_w"], params["out_b"])


# ---------------- parameters (deterministic random init) ----------------

def init_params(key):
    def nrm(k, shape, dtype=jnp.float32):
        return (0.02 * jax.random.normal(k, shape, dtype=jnp.float32)).astype(dtype)

    scale = 1.0 / math.sqrt(HEAD_DIM)
    keys = iter(jax.random.split(key, 6 * LAYERS + 8))
    p = {
        "word_emb": nrm(next(keys), (VOCAB, HIDDEN)),
        "pos_emb": nrm(next(keys), (MAX_POS, HIDDEN)),
        "type_emb": nrm(next(keys), (TYPE_VOCAB, HIDDEN)),
        "emb_ln_g": jnp.ones((1, HIDDEN), jnp.float32),
        "emb_ln_b": jnp.zeros((1, HIDDEN), jnp.float32),
        "layers": [],
        "pool_w": nrm(next(keys), (HIDDEN, HIDDEN), jnp.bfloat16),
        "pool_b": jnp.zeros((1, HIDDEN), jnp.float32),
        "out_w": nrm(next(keys), (1, HIDDEN)),          # final Linear(H, 1) as a row vector
        "out_b": jnp.zeros((1, 1), jnp.float32),
    }
    for _ in range(LAYERS):
        # 1/sqrt(head_dim) folded into the q projection (columns [0:H] of wqkv).
        wq = nrm(next(keys), (HIDDEN, HIDDEN)) * scale
        wk = nrm(next(keys), (HIDDEN, HIDDEN))
        wv = nrm(next(keys), (HIDDEN, HIDDEN))
        lyr = {
            "wqkv": jnp.concatenate([wq, wk, wv], axis=1).astype(jnp.bfloat16),
            "bqkv": jnp.zeros((1, 3 * HIDDEN), jnp.float32),
            "wo": nrm(next(keys), (HIDDEN, HIDDEN), jnp.bfloat16),
            "bo": jnp.zeros((1, HIDDEN), jnp.float32),
            "ln1_g": jnp.ones((1, HIDDEN), jnp.float32),
            "ln1_b": jnp.zeros((1, HIDDEN), jnp.float32),
            "w1": nrm(next(keys), (HIDDEN, INTERMEDIATE), jnp.bfloat16),
            "b1": jnp.zeros((1, INTERMEDIATE), jnp.float32),
            "w2": nrm(next(keys), (INTERMEDIATE, HIDDEN), jnp.bfloat16),
            "b2": jnp.zeros((1, HIDDEN), jnp.float32),
            "ln2_g": jnp.ones((1, HIDDEN), jnp.float32),
            "ln2_b": jnp.zeros((1, HIDDEN), jnp.float32),
        }
        p["layers"].append(lyr)
    return p


# ---------------- forward pass (mirrors BertBaseUncased.forward) ----------------

def bert_base_uncased_forward(params, ids, token_type_ids, mask):
    B, S = ids.shape

    # --- embeddings (gathers are glue in plain JAX; LayerNorm fused into layer 0) ---
    pos = jnp.arange(S)
    emb = (params["word_emb"][ids]
           + params["pos_emb"][pos][None, :, :]
           + params["type_emb"][token_type_ids]).astype(jnp.float32)
    # embedding dropout -> identity (inference semantics)

    ext_mask = ((1.0 - mask.astype(jnp.float32)) * -10000.0).reshape(B, 1, S)

    # --- encoder: one fused Pallas kernel per layer (attn + FFN + LNs) ---
    x = emb
    for i, lyr in enumerate(params["layers"]):
        x = encoder_layer(x, ext_mask, lyr,
                          params["emb_ln_g"], params["emb_ln_b"],
                          input_ln=(i == 0))

    # --- pooler: tanh(W * h_CLS + b) -> dropout (identity) -> Linear(H, 1) ---
    cls = x[:, 0, :]
    return pooler_head(cls, params)                 # (B, 1)


if __name__ == "__main__":
    key = jax.random.PRNGKey(0)
    kp, kid, ktt, km = jax.random.split(key, 4)

    B, S = 2, 8
    params = init_params(kp)
    ids = jax.random.randint(kid, (B, S), 0, VOCAB, dtype=jnp.int32)
    token_type_ids = jax.random.randint(ktt, (B, S), 0, TYPE_VOCAB, dtype=jnp.int32)
    mask = jnp.ones((B, S), dtype=jnp.int32).at[1, -2:].set(0)  # pad last 2 tokens of batch 1

    out = bert_base_uncased_forward(params, ids, token_type_ids, mask)
    out = jax.block_until_ready(out)
    assert out.shape == (B, 1), out.shape
    print("KERNEL_OK")
</pallas_src>

<mosaic_0001>
module attributes {stable_mosaic.version = 11 : i64} {
  func.func @_encoder_layer_kernel(%arg0: i32, %arg1: memref<1x8x128xf32, #tpu.memory_space<vmem>>, %arg2: memref<1x1x8xf32, #tpu.memory_space<vmem>>, %arg3: memref<128x384xbf16, #tpu.memory_space<vmem>>, %arg4: memref<1x384xf32, #tpu.memory_space<vmem>>, %arg5: memref<128x128xbf16, #tpu.memory_space<vmem>>, %arg6: memref<1x128xf32, #tpu.memory_space<vmem>>, %arg7: memref<1x128xf32, #tpu.memory_space<vmem>>, %arg8: memref<1x128xf32, #tpu.memory_space<vmem>>, %arg9: memref<128x512xbf16, #tpu.memory_space<vmem>>, %arg10: memref<1x512xf32, #tpu.memory_space<vmem>>, %arg11: memref<512x128xbf16, #tpu.memory_space<vmem>>, %arg12: memref<1x128xf32, #tpu.memory_space<vmem>>, %arg13: memref<1x128xf32, #tpu.memory_space<vmem>>, %arg14: memref<1x128xf32, #tpu.memory_space<vmem>>, %arg15: memref<1x128xf32, #tpu.memory_space<vmem>>, %arg16: memref<1x128xf32, #tpu.memory_space<vmem>>, %arg17: memref<1x8x128xf32, #tpu.memory_space<vmem>>) attributes {dimension_semantics = [#tpu.dimension_semantics<parallel>], iteration_bounds = array<i64: 2>, scalar_prefetch = 0 : i64, scratch_operands = 0 : i64, tpu.core_type = #tpu.core_type<tc>, window_params = [{transform_indices = @transform_0, window_bounds = array<i64: 1, 8, 128>}, {transform_indices = @transform_1, window_bounds = array<i64: 1, 1, 8>}, {pipeline_mode = #tpu.pipeline_mode<synchronous>, transform_indices = @transform_2, window_bounds = array<i64: 128, 384>}, {pipeline_mode = #tpu.pipeline_mode<synchronous>, transform_indices = @transform_3, window_bounds = array<i64: 1, 384>}, {pipeline_mode = #tpu.pipeline_mode<synchronous>, transform_indices = @transform_4, window_bounds = array<i64: 128, 128>}, {pipeline_mode = #tpu.pipeline_mode<synchronous>, transform_indices = @transform_5, window_bounds = array<i64: 1, 128>}, {pipeline_mode = #tpu.pipeline_mode<synchronous>, transform_indices = @transform_6, window_bounds = array<i64: 1, 128>}, {pipeline_mode = #tpu.pipeline_mode<synchronous>, transform_indices = @transform_7, window_bounds = array<i64: 1, 128>}, {pipeline_mode = #tpu.pipeline_mode<synchronous>, transform_indices = @transform_8, window_bounds = array<i64: 128, 512>}, {pipeline_mode = #tpu.pipeline_mode<synchronous>, transform_indices = @transform_9, window_bounds = array<i64: 1, 512>}, {pipeline_mode = #tpu.pipeline_mode<synchronous>, transform_indices = @transform_10, window_bounds = array<i64: 512, 128>}, {pipeline_mode = #tpu.pipeline_mode<synchronous>, transform_indices = @transform_11, window_bounds = array<i64: 1, 128>}, {pipeline_mode = #tpu.pipeline_mode<synchronous>, transform_indices = @transform_12, window_bounds = array<i64: 1, 128>}, {pipeline_mode = #tpu.pipeline_mode<synchronous>, transform_indices = @transform_13, window_bounds = array<i64: 1, 128>}, {pipeline_mode = #tpu.pipeline_mode<synchronous>, transform_indices = @transform_14, window_bounds = array<i64: 1, 128>}, {pipeline_mode = #tpu.pipeline_mode<synchronous>, transform_indices = @transform_15, window_bounds = array<i64: 1, 128>}, {transform_indices = @transform_16, window_bounds = array<i64: 1, 8, 128>}]} {
    %c0 = arith.constant 0 : index
    %c0_0 = arith.constant 0 : index
    %c0_1 = arith.constant 0 : index
    %0 = vector.load %arg1[%c0, %c0_0, %c0_1] : memref<1x8x128xf32, #tpu.memory_space<vmem>>, vector<1x8x128xf32>
    %1 = vector.shape_cast %0 : vector<1x8x128xf32> to vector<8x128xf32>
    %c0_2 = arith.constant 0 : index
    %c0_3 = arith.constant 0 : index
    %2 = vector.load %arg15[%c0_2, %c0_3] : memref<1x128xf32, #tpu.memory_space<vmem>>, vector<1x128xf32>
    %c0_4 = arith.constant 0 : index
    %c0_5 = arith.constant 0 : index
    %3 = vector.load %arg16[%c0_4, %c0_5] : memref<1x128xf32, #tpu.memory_space<vmem>>, vector<1x128xf32>
    %cst = arith.constant dense<0.000000e+00> : vector<8xf32>
    %4 = vector.multi_reduction <add>, %1, %cst [1] : vector<8x128xf32> to vector<8xf32>
    %5 = vector.shape_cast %4 : vector<8xf32> to vector<8x1xf32>
    %cst_6 = arith.constant 1.280000e+02 : f32
    %6 = vector.broadcast %cst_6 : f32 to vector<8x1xf32>
    %7 = arith.divf %5, %6 : vector<8x1xf32>
    %8 = vector.broadcast %7 : vector<8x1xf32> to vector<8x128xf32>
    %9 = arith.subf %1, %8 : vector<8x128xf32>
    %10 = arith.mulf %9, %9 : vector<8x128xf32>
    %cst_7 = arith.constant dense<0.000000e+00> : vector<8xf32>
    %11 = vector.multi_reduction <add>, %10, %cst_7 [1] : vector<8x128xf32> to vector<8xf32>
    %12 = vector.shape_cast %11 : vector<8xf32> to vector<8x1xf32>
    %cst_8 = arith.constant 1.280000e+02 : f32
    %13 = vector.broadcast %cst_8 : f32 to vector<8x1xf32>
    %14 = arith.divf %12, %13 : vector<8x1xf32>
    %15 = vector.broadcast %7 : vector<8x1xf32> to vector<8x128xf32>
    %16 = arith.subf %1, %15 : vector<8x128xf32>
    %cst_9 = arith.constant 9.99999996E-13 : f32
    %17 = vector.broadcast %cst_9 : f32 to vector<8x1xf32>
    %18 = arith.addf %14, %17 : vector<8x1xf32>
    %19 = math.rsqrt %18 : vector<8x1xf32>
    %20 = vector.broadcast %19 : vector<8x1xf32> to vector<8x128xf32>
    %21 = arith.mulf %16, %20 : vector<8x128xf32>
    %22 = vector.broadcast %2 : vector<1x128xf32> to vector<8x128xf32>
    %23 = arith.mulf %21, %22 : vector<8x128xf32>
    %24 = vector.broadcast %3 : vector<1x128xf32> to vector<8x128xf32>
    %25 = arith.addf %23, %24 : vector<8x128xf32>
    %26 = arith.truncf %25 : vector<8x128xf32> to vector<8x128xbf16>
    %c0_10 = arith.constant 0 : index
    %c0_11 = arith.constant 0 : index
    %27 = vector.load %arg3[%c0_10, %c0_11] : memref<128x384xbf16, #tpu.memory_space<vmem>>, vector<128x384xbf16>
    %cst_12 = arith.constant dense<0.000000e+00> : vector<8x384xf32>
    %28 = tpu.matmul %26, %27, %cst_12 {dimension_numbers = #tpu.dot_dimension_numbers<[1], [0], [0], [1], [0, 0, 1, 1], [], []>} : vector<8x128xbf16>, vector<128x384xbf16>, vector<8x384xf32> -> vector<8x384xf32>
    %c0_13 = arith.constant 0 : index
    %c0_14 = arith.constant 0 : index
    %29 = vector.load %arg4[%c0_13, %c0_14] : memref<1x384xf32, #tpu.memory_space<vmem>>, vector<1x384xf32>
    %30 = vector.broadcast %29 : vector<1x384xf32> to vector<8x384xf32>
    %31 = arith.addf %28, %30 : vector<8x384xf32>
    %c0_15 = arith.constant 0 : index
    %c0_16 = arith.constant 0 : index
    %c0_17 = arith.constant 0 : index
    %32 = vector.load %arg2[%c0_15, %c0_16, %c0_17] : memref<1x1x8xf32, #tpu.memory_space<vmem>>, vector<1x1x8xf32>
    %33 = vector.shape_cast %32 : vector<1x1x8xf32> to vector<1x8xf32>
    %34 = vector.extract_strided_slice %31 {offsets = [0, 0], sizes = [8, 32], strides = [1, 1]} : vector<8x384xf32> to vector<8x32xf32>
    %35 = arith.truncf %34 : vector<8x32xf32> to vector<8x32xbf16>
    %36 = vector.extract_strided_slice %31 {offsets = [0, 128], sizes = [8, 32], strides = [1, 1]} : vector<8x384xf32> to vector<8x32xf32>
    %37 = arith.truncf %36 : vector<8x32xf32> to vector<8x32xbf16>
    %38 = vector.extract_strided_slice %31 {offsets = [0, 256], sizes = [8, 32], strides = [1, 1]} : vector<8x384xf32> to vector<8x32xf32>
    %39 = arith.truncf %38 : vector<8x32xf32> to vector<8x32xbf16>
    %40 = tpu.transpose %37, [1, 0] : vector<8x32xbf16> -> vector<32x8xbf16>
    %cst_18 = arith.constant dense<0.000000e+00> : vector<8x8xf32>
    %41 = tpu.matmul %35, %40, %cst_18 {dimension_numbers = #tpu.dot_dimension_numbers<[1], [0], [0], [1], [0, 0, 1, 1], [], []>} : vector<8x32xbf16>, vector<32x8xbf16>, vector<8x8xf32> -> vector<8x8xf32>
    %42 = vector.broadcast %33 : vector<1x8xf32> to vector<8x8xf32>
    %43 = arith.addf %41, %42 : vector<8x8xf32>
    %cst_19 = arith.constant dense<0xFF800000> : vector<8xf32>
    %44 = vector.multi_reduction <maximumf>, %43, %cst_19 [1] : vector<8x8xf32> to vector<8xf32>
    %45 = vector.shape_cast %44 : vector<8xf32> to vector<8x1xf32>
    %46 = vector.broadcast %45 : vector<8x1xf32> to vector<8x8xf32>
    %47 = arith.subf %43, %46 : vector<8x8xf32>
    %48 = math.exp %47 : vector<8x8xf32>
    %cst_20 = arith.constant dense<0.000000e+00> : vector<8xf32>
    %49 = vector.multi_reduction <add>, %48, %cst_20 [1] : vector<8x8xf32> to vector<8xf32>
    %50 = vector.shape_cast %49 : vector<8xf32> to vector<8x1xf32>
    %51 = tpu.reciprocal %50 {approx = true} : vector<8x1xf32> -> vector<8x1xf32>
    %52 = vector.broadcast %51 : vector<8x1xf32> to vector<8x8xf32>
    %53 = arith.mulf %48, %52 : vector<8x8xf32>
    %54 = arith.truncf %53 : vector<8x8xf32> to vector<8x8xbf16>
    %cst_21 = arith.constant dense<0.000000e+00> : vector<8x32xf32>
    %55 = tpu.matmul %54, %39, %cst_21 {dimension_numbers = #tpu.dot_dimension_numbers<[1], [0], [0], [1], [0, 0, 1, 1], [], []>} : vector<8x8xbf16>, vector<8x32xbf16>, vector<8x32xf32> -> vector<8x32xf32>
    %56 = vector.extract_strided_slice %31 {offsets = [0, 32], sizes = [8, 32], strides = [1, 1]} : vector<8x384xf32> to vector<8x32xf32>
    %57 = arith.truncf %56 : vector<8x32xf32> to vector<8x32xbf16>
    %58 = vector.extract_strided_slice %31 {offsets = [0, 160], sizes = [8, 32], strides = [1, 1]} : vector<8x384xf32> to vector<8x32xf32>
    %59 = arith.truncf %58 : vector<8x32xf32> to vector<8x32xbf16>
    %60 = vector.extract_strided_slice %31 {offsets = [0, 288], sizes = [8, 32], strides = [1, 1]} : vector<8x384xf32> to vector<8x32xf32>
    %61 = arith.truncf %60 : vector<8x32xf32> to vector<8x32xbf16>
    %62 = tpu.transpose %59, [1, 0] : vector<8x32xbf16> -> vector<32x8xbf16>
    %cst_22 = arith.constant dense<0.000000e+00> : vector<8x8xf32>
    %63 = tpu.matmul %57, %62, %cst_22 {dimension_numbers = #tpu.dot_dimension_numbers<[1], [0], [0], [1], [0, 0, 1, 1], [], []>} : vector<8x32xbf16>, vector<32x8xbf16>, vector<8x8xf32> -> vector<8x8xf32>
    %64 = vector.broadcast %33 : vector<1x8xf32> to vector<8x8xf32>
    %65 = arith.addf %63, %64 : vector<8x8xf32>
    %cst_23 = arith.constant dense<0xFF800000> : vector<8xf32>
    %66 = vector.multi_reduction <maximumf>, %65, %cst_23 [1] : vector<8x8xf32> to vector<8xf32>
    %67 = vector.shape_cast %66 : vector<8xf32> to vector<8x1xf32>
    %68 = vector.broadcast %67 : vector<8x1xf32> to vector<8x8xf32>
    %69 = arith.subf %65, %68 : vector<8x8xf32>
    %70 = math.exp %69 : vector<8x8xf32>
    %cst_24 = arith.constant dense<0.000000e+00> : vector<8xf32>
    %71 = vector.multi_reduction <add>, %70, %cst_24 [1] : vector<8x8xf32> to vector<8xf32>
    %72 = vector.shape_cast %71 : vector<8xf32> to vector<8x1xf32>
    %73 = tpu.reciprocal %72 {approx = true} : vector<8x1xf32> -> vector<8x1xf32>
    %74 = vector.broadcast %73 : vector<8x1xf32> to vector<8x8xf32>
    %75 = arith.mulf %70, %74 : vector<8x8xf32>
    %76 = arith.truncf %75 : vector<8x8xf32> to vector<8x8xbf16>
    %cst_25 = arith.constant dense<0.000000e+00> : vector<8x32xf32>
    %77 = tpu.matmul %76, %61, %cst_25 {dimension_numbers = #tpu.dot_dimension_numbers<[1], [0], [0], [1], [0, 0, 1, 1], [], []>} : vector<8x8xbf16>, vector<8x32xbf16>, vector<8x32xf32> -> vector<8x32xf32>
    %78 = vector.extract_strided_slice %31 {offsets = [0, 64], sizes = [8, 32], strides = [1, 1]} : vector<8x384xf32> to vector<8x32xf32>
    %79 = arith.truncf %78 : vector<8x32xf32> to vector<8x32xbf16>
    %80 = vector.extract_strided_slice %31 {offsets = [0, 192], sizes = [8, 32], strides = [1, 1]} : vector<8x384xf32> to vector<8x32xf32>
    %81 = arith.truncf %80 : vector<8x32xf32> to vector<8x32xbf16>
    %82 = vector.extract_strided_slice %31 {offsets = [0, 320], sizes = [8, 32], strides = [1, 1]} : vector<8x384xf32> to vector<8x32xf32>
    %83 = arith.truncf %82 : vector<8x32xf32> to vector<8x32xbf16>
    %84 = tpu.transpose %81, [1, 0] : vector<8x32xbf16> -> vector<32x8xbf16>
    %cst_26 = arith.constant dense<0.000000e+00> : vector<8x8xf32>
    %85 = tpu.matmul %79, %84, %cst_26 {dimension_numbers = #tpu.dot_dimension_numbers<[1], [0], [0], [1], [0, 0, 1, 1], [], []>} : vector<8x32xbf16>, vector<32x8xbf16>, vector<8x8xf32> -> vector<8x8xf32>
    %86 = vector.broadcast %33 : vector<1x8xf32> to vector<8x8xf32>
    %87 = arith.addf %85, %86 : vector<8x8xf32>
    %cst_27 = arith.constant dense<0xFF800000> : vector<8xf32>
    %88 = vector.multi_reduction <maximumf>, %87, %cst_27 [1] : vector<8x8xf32> to vector<8xf32>
    %89 = vector.shape_cast %88 : vector<8xf32> to vector<8x1xf32>
    %90 = vector.broadcast %89 : vector<8x1xf32> to vector<8x8xf32>
    %91 = arith.subf %87, %90 : vector<8x8xf32>
    %92 = math.exp %91 : vector<8x8xf32>
    %cst_28 = arith.constant dense<0.000000e+00> : vector<8xf32>
    %93 = vector.multi_reduction <add>, %92, %cst_28 [1] : vector<8x8xf32> to vector<8xf32>
    %94 = vector.shape_cast %93 : vector<8xf32> to vector<8x1xf32>
    %95 = tpu.reciprocal %94 {approx = true} : vector<8x1xf32> -> vector<8x1xf32>
    %96 = vector.broadcast %95 : vector<8x1xf32> to vector<8x8xf32>
    %97 = arith.mulf %92, %96 : vector<8x8xf32>
    %98 = arith.truncf %97 : vector<8x8xf32> to vector<8x8xbf16>
    %cst_29 = arith.constant dense<0.000000e+00> : vector<8x32xf32>
    %99 = tpu.matmul %98, %83, %cst_29 {dimension_numbers = #tpu.dot_dimension_numbers<[1], [0], [0], [1], [0, 0, 1, 1], [], []>} : vector<8x8xbf16>, vector<8x32xbf16>, vector<8x32xf32> -> vector<8x32xf32>
    %100 = vector.extract_strided_slice %31 {offsets = [0, 96], sizes = [8, 32], strides = [1, 1]} : vector<8x384xf32> to vector<8x32xf32>
    %101 = arith.truncf %100 : vector<8x32xf32> to vector<8x32xbf16>
    %102 = vector.extract_strided_slice %31 {offsets = [0, 224], sizes = [8, 32], strides = [1, 1]} : vector<8x384xf32> to vector<8x32xf32>
    %103 = arith.truncf %102 : vector<8x32xf32> to vector<8x32xbf16>
    %104 = vector.extract_strided_slice %31 {offsets = [0, 352], sizes = [8, 32], strides = [1, 1]} : vector<8x384xf32> to vector<8x32xf32>
    %105 = arith.truncf %104 : vector<8x32xf32> to vector<8x32xbf16>
    %106 = tpu.transpose %103, [1, 0] : vector<8x32xbf16> -> vector<32x8xbf16>
    %cst_30 = arith.constant dense<0.000000e+00> : vector<8x8xf32>
    %107 = tpu.matmul %101, %106, %cst_30 {dimension_numbers = #tpu.dot_dimension_numbers<[1], [0], [0], [1], [0, 0, 1, 1], [], []>} : vector<8x32xbf16>, vector<32x8xbf16>, vector<8x8xf32> -> vector<8x8xf32>
    %108 = vector.broadcast %33 : vector<1x8xf32> to vector<8x8xf32>
    %109 = arith.addf %107, %108 : vector<8x8xf32>
    %cst_31 = arith.constant dense<0xFF800000> : vector<8xf32>
    %110 = vector.multi_reduction <maximumf>, %109, %cst_31 [1] : vector<8x8xf32> to vector<8xf32>
    %111 = vector.shape_cast %110 : vector<8xf32> to vector<8x1xf32>
    %112 = vector.broadcast %111 : vector<8x1xf32> to vector<8x8xf32>
    %113 = arith.subf %109, %112 : vector<8x8xf32>
    %114 = math.exp %113 : vector<8x8xf32>
    %cst_32 = arith.constant dense<0.000000e+00> : vector<8xf32>
    %115 = vector.multi_reduction <add>, %114, %cst_32 [1] : vector<8x8xf32> to vector<8xf32>
    %116 = vector.shape_cast %115 : vector<8xf32> to vector<8x1xf32>
    %117 = tpu.reciprocal %116 {approx = true} : vector<8x1xf32> -> vector<8x1xf32>
    %118 = vector.broadcast %117 : vector<8x1xf32> to vector<8x8xf32>
    %119 = arith.mulf %114, %118 : vector<8x8xf32>
    %120 = arith.truncf %119 : vector<8x8xf32> to vector<8x8xbf16>
    %cst_33 = arith.constant dense<0.000000e+00> : vector<8x32xf32>
    %121 = tpu.matmul %120, %105, %cst_33 {dimension_numbers = #tpu.dot_dimension_numbers<[1], [0], [0], [1], [0, 0, 1, 1], [], []>} : vector<8x8xbf16>, vector<8x32xbf16>, vector<8x32xf32> -> vector<8x32xf32>
    %122 = tpu.concatenate %55, %77, %99, %121 in 1 : vector<8x32xf32>, vector<8x32xf32>, vector<8x32xf32>, vector<8x32xf32> -> vector<8x128xf32>
    %123 = arith.truncf %122 : vector<8x128xf32> to vector<8x128xbf16>
    %c0_34 = arith.constant 0 : index
    %c0_35 = arith.constant 0 : index
    %124 = vector.load %arg5[%c0_34, %c0_35] : memref<128x128xbf16, #tpu.memory_space<vmem>>, vector<128x128xbf16>
    %cst_36 = arith.constant dense<0.000000e+00> : vector<8x128xf32>
    %125 = tpu.matmul %123, %124, %cst_36 {dimension_numbers = #tpu.dot_dimension_numbers<[1], [0], [0], [1], [0, 0, 1, 1], [], []>} : vector<8x128xbf16>, vector<128x128xbf16>, vector<8x128xf32> -> vector<8x128xf32>
    %c0_37 = arith.constant 0 : index
    %c0_38 = arith.constant 0 : index
    %126 = vector.load %arg6[%c0_37, %c0_38] : memref<1x128xf32, #tpu.memory_space<vmem>>, vector<1x128xf32>
    %127 = vector.broadcast %126 : vector<1x128xf32> to vector<8x128xf32>
    %128 = arith.addf %125, %127 : vector<8x128xf32>
    %129 = arith.addf %128, %25 : vector<8x128xf32>
    %c0_39 = arith.constant 0 : index
    %c0_40 = arith.constant 0 : index
    %130 = vector.load %arg7[%c0_39, %c0_40] : memref<1x128xf32, #tpu.memory_space<vmem>>, vector<1x128xf32>
    %c0_41 = arith.constant 0 : index
    %c0_42 = arith.constant 0 : index
    %131 = vector.load %arg8[%c0_41, %c0_42] : memref<1x128xf32, #tpu.memory_space<vmem>>, vector<1x128xf32>
    %cst_43 = arith.constant dense<0.000000e+00> : vector<8xf32>
    %132 = vector.multi_reduction <add>, %129, %cst_43 [1] : vector<8x128xf32> to vector<8xf32>
    %133 = vector.shape_cast %132 : vector<8xf32> to vector<8x1xf32>
    %cst_44 = arith.constant 1.280000e+02 : f32
    %134 = vector.broadcast %cst_44 : f32 to vector<8x1xf32>
    %135 = arith.divf %133, %134 : vector<8x1xf32>
    %136 = vector.broadcast %135 : vector<8x1xf32> to vector<8x128xf32>
    %137 = arith.subf %129, %136 : vector<8x128xf32>
    %138 = arith.mulf %137, %137 : vector<8x128xf32>
    %cst_45 = arith.constant dense<0.000000e+00> : vector<8xf32>
    %139 = vector.multi_reduction <add>, %138, %cst_45 [1] : vector<8x128xf32> to vector<8xf32>
    %140 = vector.shape_cast %139 : vector<8xf32> to vector<8x1xf32>
    %cst_46 = arith.constant 1.280000e+02 : f32
    %141 = vector.broadcast %cst_46 : f32 to vector<8x1xf32>
    %142 = arith.divf %140, %141 : vector<8x1xf32>
    %143 = vector.broadcast %135 : vector<8x1xf32> to vector<8x128xf32>
    %144 = arith.subf %129, %143 : vector<8x128xf32>
    %cst_47 = arith.constant 9.99999996E-13 : f32
    %145 = vector.broadcast %cst_47 : f32 to vector<8x1xf32>
    %146 = arith.addf %142, %145 : vector<8x1xf32>
    %147 = math.rsqrt %146 : vector<8x1xf32>
    %148 = vector.broadcast %147 : vector<8x1xf32> to vector<8x128xf32>
    %149 = arith.mulf %144, %148 : vector<8x128xf32>
    %150 = vector.broadcast %130 : vector<1x128xf32> to vector<8x128xf32>
    %151 = arith.mulf %149, %150 : vector<8x128xf32>
    %152 = vector.broadcast %131 : vector<1x128xf32> to vector<8x128xf32>
    %153 = arith.addf %151, %152 : vector<8x128xf32>
    %154 = arith.truncf %153 : vector<8x128xf32> to vector<8x128xbf16>
    %c0_48 = arith.constant 0 : index
    %c0_49 = arith.constant 0 : index
    %155 = vector.load %arg9[%c0_48, %c0_49] : memref<128x512xbf16, #tpu.memory_space<vmem>>, vector<128x512xbf16>
    %cst_50 = arith.constant dense<0.000000e+00> : vector<8x512xf32>
    %156 = tpu.matmul %154, %155, %cst_50 {dimension_numbers = #tpu.dot_dimension_numbers<[1], [0], [0], [1], [0, 0, 1, 1], [], []>} : vector<8x128xbf16>, vector<128x512xbf16>, vector<8x512xf32> -> vector<8x512xf32>
    %c0_51 = arith.constant 0 : index
    %c0_52 = arith.constant 0 : index
    %157 = vector.load %arg10[%c0_51, %c0_52] : memref<1x512xf32, #tpu.memory_space<vmem>>, vector<1x512xf32>
    %158 = vector.broadcast %157 : vector<1x512xf32> to vector<8x512xf32>
    %159 = arith.addf %156, %158 : vector<8x512xf32>
    %cst_53 = arith.constant 5.000000e-01 : f32
    %160 = vector.broadcast %cst_53 : f32 to vector<8x512xf32>
    %161 = arith.mulf %160, %159 : vector<8x512xf32>
    %cst_54 = arith.constant 4.471500e-02 : f32
    %162 = vector.broadcast %cst_54 : f32 to vector<8x512xf32>
    %163 = arith.mulf %162, %159 : vector<8x512xf32>
    %164 = arith.mulf %163, %159 : vector<8x512xf32>
    %165 = arith.mulf %164, %159 : vector<8x512xf32>
    %166 = arith.addf %159, %165 : vector<8x512xf32>
    %cst_55 = arith.constant 0.797884583 : f32
    %167 = vector.broadcast %cst_55 : f32 to vector<8x512xf32>
    %168 = arith.mulf %167, %166 : vector<8x512xf32>
    %169 = math.tanh %168 : vector<8x512xf32>
    %cst_56 = arith.constant 1.000000e+00 : f32
    %170 = vector.broadcast %cst_56 : f32 to vector<8x512xf32>
    %171 = arith.addf %170, %169 : vector<8x512xf32>
    %172 = arith.mulf %161, %171 : vector<8x512xf32>
    %173 = arith.truncf %172 : vector<8x512xf32> to vector<8x512xbf16>
    %c0_57 = arith.constant 0 : index
    %c0_58 = arith.constant 0 : index
    %174 = vector.load %arg11[%c0_57, %c0_58] : memref<512x128xbf16, #tpu.memory_space<vmem>>, vector<512x128xbf16>
    %cst_59 = arith.constant dense<0.000000e+00> : vector<8x128xf32>
    %175 = tpu.matmul %173, %174, %cst_59 {dimension_numbers = #tpu.dot_dimension_numbers<[1], [0], [0], [1], [0, 0, 1, 1], [], []>} : vector<8x512xbf16>, vector<512x128xbf16>, vector<8x128xf32> -> vector<8x128xf32>
    %c0_60 = arith.constant 0 : index
    %c0_61 = arith.constant 0 : index
    %176 = vector.load %arg12[%c0_60, %c0_61] : memref<1x128xf32, #tpu.memory_space<vmem>>, vector<1x128xf32>
    %177 = vector.broadcast %176 : vector<1x128xf32> to vector<8x128xf32>
    %178 = arith.addf %175, %177 : vector<8x128xf32>
    %179 = arith.addf %178, %153 : vector<8x128xf32>
    %c0_62 = arith.constant 0 : index
    %c0_63 = arith.constant 0 : index
    %180 = vector.load %arg13[%c0_62, %c0_63] : memref<1x128xf32, #tpu.memory_space<vmem>>, vector<1x128xf32>
    %c0_64 = arith.constant 0 : index
    %c0_65 = arith.constant 0 : index
    %181 = vector.load %arg14[%c0_64, %c0_65] : memref<1x128xf32, #tpu.memory_space<vmem>>, vector<1x128xf32>
    %cst_66 = arith.constant dense<0.000000e+00> : vector<8xf32>
    %182 = vector.multi_reduction <add>, %179, %cst_66 [1] : vector<8x128xf32> to vector<8xf32>
    %183 = vector.shape_cast %182 : vector<8xf32> to vector<8x1xf32>
    %cst_67 = arith.constant 1.280000e+02 : f32
    %184 = vector.broadcast %cst_67 : f32 to vector<8x1xf32>
    %185 = arith.divf %183, %184 : vector<8x1xf32>
    %186 = vector.broadcast %185 : vector<8x1xf32> to vector<8x128xf32>
    %187 = arith.subf %179, %186 : vector<8x128xf32>
    %188 = arith.mulf %187, %187 : vector<8x128xf32>
    %cst_68 = arith.constant dense<0.000000e+00> : vector<8xf32>
    %189 = vector.multi_reduction <add>, %188, %cst_68 [1] : vector<8x128xf32> to vector<8xf32>
    %190 = vector.shape_cast %189 : vector<8xf32> to vector<8x1xf32>
    %cst_69 = arith.constant 1.280000e+02 : f32
    %191 = vector.broadcast %cst_69 : f32 to vector<8x1xf32>
    %192 = arith.divf %190, %191 : vector<8x1xf32>
    %193 = vector.broadcast %185 : vector<8x1xf32> to vector<8x128xf32>
    %194 = arith.subf %179, %193 : vector<8x128xf32>
    %cst_70 = arith.constant 9.99999996E-13 : f32
    %195 = vector.broadcast %cst_70 : f32 to vector<8x1xf32>
    %196 = arith.addf %192, %195 : vector<8x1xf32>
    %197 = math.rsqrt %196 : vector<8x1xf32>
    %198 = vector.broadcast %197 : vector<8x1xf32> to vector<8x128xf32>
    %199 = arith.mulf %194, %198 : vector<8x128xf32>
    %200 = vector.broadcast %180 : vector<1x128xf32> to vector<8x128xf32>
    %201 = arith.mulf %199, %200 : vector<8x128xf32>
    %202 = vector.broadcast %181 : vector<1x128xf32> to vector<8x128xf32>
    %203 = arith.addf %201, %202 : vector<8x128xf32>
    %c0_71 = arith.constant 0 : index
    %c0_72 = arith.constant 0 : index
    %c0_73 = arith.constant 0 : index
    %204 = vector.load %arg17[%c0_71, %c0_72, %c0_73] : memref<1x8x128xf32, #tpu.memory_space<vmem>>, vector<1x8x128xf32>
    %205 = vector.shape_cast %204 : vector<1x8x128xf32> to vector<8x128xf32>
    %206 = vector.shape_cast %203 : vector<8x128xf32> to vector<1x8x128xf32>
    tpu.vector_store %arg17[%c0_71, %c0_72, %c0_73], %206 {strides = array<i32>} : memref<1x8x128xf32, #tpu.memory_space<vmem>>, vector<1x8x128xf32>,
    return
  }
  func.func @transform_0(%arg0: i32) -> (i32, i32, i32) {
    %c0_i32 = arith.constant 0 : i32
    %c0_i32_0 = arith.constant 0 : i32
    %c0_i32_1 = arith.constant 0 : i32
    return %arg0, %c0_i32, %c0_i32_0 : i32, i32, i32
  }
  func.func @transform_1(%arg0: i32) -> (i32, i32, i32) {
    %c0_i32 = arith.constant 0 : i32
    %c0_i32_0 = arith.constant 0 : i32
    %c0_i32_1 = arith.constant 0 : i32
    return %arg0, %c0_i32, %c0_i32_0 : i32, i32, i32
  }
  func.func @transform_2(%arg0: i32) -> (i32, i32) {
    %c0_i32 = arith.constant 0 : i32
    %c0_i32_0 = arith.constant 0 : i32
    %c0_i32_1 = arith.constant 0 : i32
    return %c0_i32, %c0_i32_0 : i32, i32
  }
  func.func @transform_3(%arg0: i32) -> (i32, i32) {
    %c0_i32 = arith.constant 0 : i32
    %c0_i32_0 = arith.constant 0 : i32
    %c0_i32_1 = arith.constant 0 : i32
    return %c0_i32, %c0_i32_0 : i32, i32
  }
  func.func @transform_4(%arg0: i32) -> (i32, i32) {
    %c0_i32 = arith.constant 0 : i32
    %c0_i32_0 = arith.constant 0 : i32
    %c0_i32_1 = arith.constant 0 : i32
    return %c0_i32, %c0_i32_0 : i32, i32
  }
  func.func @transform_5(%arg0: i32) -> (i32, i32) {
    %c0_i32 = arith.constant 0 : i32
    %c0_i32_0 = arith.constant 0 : i32
    %c0_i32_1 = arith.constant 0 : i32
    return %c0_i32, %c0_i32_0 : i32, i32
  }
  func.func @transform_6(%arg0: i32) -> (i32, i32) {
    %c0_i32 = arith.constant 0 : i32
    %c0_i32_0 = arith.constant 0 : i32
    %c0_i32_1 = arith.constant 0 : i32
    return %c0_i32, %c0_i32_0 : i32, i32
  }
  func.func @transform_7(%arg0: i32) -> (i32, i32) {
    %c0_i32 = arith.constant 0 : i32
    %c0_i32_0 = arith.constant 0 : i32
    %c0_i32_1 = arith.constant 0 : i32
    return %c0_i32, %c0_i32_0 : i32, i32
  }
  func.func @transform_8(%arg0: i32) -> (i32, i32) {
    %c0_i32 = arith.constant 0 : i32
    %c0_i32_0 = arith.constant 0 : i32
    %c0_i32_1 = arith.constant 0 : i32
    return %c0_i32, %c0_i32_0 : i32, i32
  }
  func.func @transform_9(%arg0: i32) -> (i32, i32) {
    %c0_i32 = arith.constant 0 : i32
    %c0_i32_0 = arith.constant 0 : i32
    %c0_i32_1 = arith.constant 0 : i32
    return %c0_i32, %c0_i32_0 : i32, i32
  }
  func.func @transform_10(%arg0: i32) -> (i32, i32) {
    %c0_i32 = arith.constant 0 : i32
    %c0_i32_0 = arith.constant 0 : i32
    %c0_i32_1 = arith.constant 0 : i32
    return %c0_i32, %c0_i32_0 : i32, i32
  }
  func.func @transform_11(%arg0: i32) -> (i32, i32) {
    %c0_i32 = arith.constant 0 : i32
    %c0_i32_0 = arith.constant 0 : i32
    %c0_i32_1 = arith.constant 0 : i32
    return %c0_i32, %c0_i32_0 : i32, i32
  }
  func.func @transform_12(%arg0: i32) -> (i32, i32) {
    %c0_i32 = arith.constant 0 : i32
    %c0_i32_0 = arith.constant 0 : i32
    %c0_i32_1 = arith.constant 0 : i32
    return %c0_i32, %c0_i32_0 : i32, i32
  }
  func.func @transform_13(%arg0: i32) -> (i32, i32) {
    %c0_i32 = arith.constant 0 : i32
    %c0_i32_0 = arith.constant 0 : i32
    %c0_i32_1 = arith.constant 0 : i32
    return %c0_i32, %c0_i32_0 : i32, i32
  }
  func.func @transform_14(%arg0: i32) -> (i32, i32) {
    %c0_i32 = arith.constant 0 : i32
    %c0_i32_0 = arith.constant 0 : i32
    %c0_i32_1 = arith.constant 0 : i32
    return %c0_i32, %c0_i32_0 : i32, i32
  }
  func.func @transform_15(%arg0: i32) -> (i32, i32) {
    %c0_i32 = arith.constant 0 : i32
    %c0_i32_0 = arith.constant 0 : i32
    %c0_i32_1 = arith.constant 0 : i32
    return %c0_i32, %c0_i32_0 : i32, i32
  }
  func.func @transform_16(%arg0: i32) -> (i32, i32, i32) {
    %c0_i32 = arith.constant 0 : i32
    %c0_i32_0 = arith.constant 0 : i32
    %c0_i32_1 = arith.constant 0 : i32
    return %arg0, %c0_i32, %c0_i32_0 : i32, i32, i32
  }
}

</mosaic_0001>

<llo_original>
// kernel: tpu_custom_call.1
$region0: #{tpu_custom_call.1}
  #allocation0 [shape = 'u32[]', space=smem, size = 0x4, offset = 0x4, fixed_abs, tag = 'smem constant byte address 0x4 - core index']
  #allocation1 [shape = 'u32[144,128]{1,0:T(1,128)}', space=vmem, size = 0x12000, scoped, tag = 'internal scratch']
  %s0 = inlined_call_operand.hbm [shape: f32[2,8,128], index: 0, kind: input, shape index: {}]
  %s1 = inlined_call_operand.hbm [shape: f32[2,1,8], index: 1, kind: input, shape index: {}]
  %s2 = inlined_call_operand.hbm [shape: bf16[128,384], index: 2, kind: input, shape index: {}]
  %s3 = inlined_call_operand.vmem [shape: f32[1,384], index: 3, kind: input, shape index: {}]
  %s4 = inlined_call_operand.hbm [shape: bf16[128,128], index: 4, kind: input, shape index: {}]
  %s5 = inlined_call_operand.vmem [shape: f32[1,128], index: 5, kind: input, shape index: {}]
  %s6 = inlined_call_operand.vmem [shape: f32[1,128], index: 6, kind: input, shape index: {}]
  %s7 = inlined_call_operand.vmem [shape: f32[1,128], index: 7, kind: input, shape index: {}]
  %s8 = inlined_call_operand.hbm [shape: bf16[128,512], index: 8, kind: input, shape index: {}]
  %s9 = inlined_call_operand.vmem [shape: f32[1,512], index: 9, kind: input, shape index: {}]
  %s10 = inlined_call_operand.hbm [shape: bf16[512,128], index: 10, kind: input, shape index: {}]
  %s11 = inlined_call_operand.vmem [shape: f32[1,128], index: 11, kind: input, shape index: {}]
  %s12 = inlined_call_operand.vmem [shape: f32[1,128], index: 12, kind: input, shape index: {}]
  %s13 = inlined_call_operand.vmem [shape: f32[1,128], index: 13, kind: input, shape index: {}]
  %s14 = inlined_call_operand.vmem [shape: f32[1,128], index: 14, kind: input, shape index: {}]
  %s15 = inlined_call_operand.vmem [shape: f32[1,128], index: 15, kind: input, shape index: {}]
  %s16 = inlined_call_operand.hbm [shape: f32[2,8,128], index: 16, kind: output, shape index: {}]
  %s17 = sld [smem:[#allocation0]]
  $region121: #{tpu_custom_call.1} parent=0
    _
  %s19 = ssub.s32 1, %s17
  %s20 = scalar_select 0, %s19, %s17
  $region1: #{tpu_custom_call.1} parent=0
    #allocation2 [shape = 'u8[8192]{0}', space=vmem, size = 0x2000, scoped, tag = 'input window, operand 0']
    #allocation3 [shape = 's32[2]{0}', space=sflag, size = 0x8, scoped, tag = 'scoped memory for tpu_custom_call.1']
    #allocation4 [shape = 's32[2]{0}', space=sflag, size = 0x8, scoped, tag = 'scoped memory for tpu_custom_call.1']
    #allocation5 [shape = 'u8[1024]{0}', space=vmem, size = 0x400, scoped, tag = 'input window, operand 1']
    #allocation6 [shape = 's32[2]{0}', space=sflag, size = 0x8, scoped, tag = 'scoped memory for tpu_custom_call.1']
    #allocation7 [shape = 'u8[98304]{0}', space=vmem, size = 0x18000, scoped, tag = 'input window, operand 2, single buffered']
    #allocation8 [shape = 'u8[32768]{0}', space=vmem, size = 0x8000, scoped, tag = 'input window, operand 4, single buffered']
    #allocation9 [shape = 's32[1]{0}', space=sflag, size = 0x4, scoped, tag = 'scoped memory for tpu_custom_call.1']
    #allocation10 [shape = 'u8[131072]{0}', space=vmem, size = 0x20000, scoped, tag = 'input window, operand 8, single buffered']
    #allocation11 [shape = 'u8[131072]{0}', space=vmem, size = 0x20000, scoped, tag = 'input window, operand 10, single buffered']
    #allocation12 [shape = 's32[1]{0}', space=sflag, size = 0x4, scoped, tag = 'scoped memory for tpu_custom_call.1']
    #allocation13 [shape = 'u8[8192]{0}', space=vmem, size = 0x2000, scoped, tag = 'output window, operand 0']
    %21 = vsyncpa [#allocation3], 0
    %s22 = scalar_lea.sflag [#allocation3], 1
    %23 = vsyncpa %s22, 0
    %24 = vsyncpa [#allocation6], 0
    %s25 = scalar_lea.sflag [#allocation6], 1
    %26 = vsyncpa %s25, 0
    %27 = vsyncpa [#allocation9], 0
    %28 = vsyncpa [#allocation12], 0
    %29 = vsyncpa [#allocation4], 0
    %s30 = scalar_lea.sflag [#allocation4], 1
    %31 = vsyncpa %s30, 0
    loop: start=0, step=1, limit=4
    $region2: #{tpu_custom_call.1} parent=1 // loop_pre_header
      _
    $region3: #{tpu_custom_call.1} parent=1 // loop_header
      %s33 = sphi 0, %s37
      %p34 = scmp.ge.s32.totalorder %s33, 4
      %s43 = sphi 0, %s45
      %s46 = sphi 0, %s43
      %s47 = sphi 0, %s46
      %s63 = sphi 0, %s47
      %s69 = sphi 0, %s71
      %s72 = sphi 0, %s69
      %s73 = sphi 0, %s72
      %s89 = sphi 0, %s73
      %s93 = sphi 0, %s93
      %s95 = sphi 0, %s93
      %s96 = sphi 0, %s95
      %s110 = sphi 0, %s96
      %s114 = sphi 0, %s114
      %s116 = sphi 0, %s114
      %s117 = sphi 0, %s116
      %s131 = sphi 0, %s117
      %s135 = sphi 0, %s135
      %s137 = sphi 0, %s135
      %s138 = sphi 0, %s137
      %s152 = sphi 0, %s138
      %s156 = sphi 0, %s156
      %s158 = sphi 0, %s156
      %s159 = sphi 0, %s158
      %s173 = sphi 0, %s159
      %s177 = sphi 0, %s177
      %s179 = sphi 0, %s177
      %s180 = sphi 0, %s179
      %s194 = sphi 0, %s180
      %s198 = sphi 0, %s198
      %s200 = sphi 0, %s198
      %s201 = sphi 0, %s200
      %s215 = sphi 0, %s201
      %s219 = sphi 0, %s219
      %s221 = sphi 0, %s219
      %s222 = sphi 0, %s221
      %s236 = sphi 0, %s222
      %s240 = sphi 0, %s240
      %s242 = sphi 0, %s240
      %s243 = sphi 0, %s242
      %s257 = sphi 0, %s243
      %s261 = sphi 0, %s261
      %s263 = sphi 0, %s261
      %s264 = sphi 0, %s263
      %s278 = sphi 0, %s264
      %s282 = sphi 0, %s282
      %s284 = sphi 0, %s282
      %s285 = sphi 0, %s284
      %s299 = sphi 0, %s285
      %s303 = sphi 0, %s303
      %s305 = sphi 0, %s303
      %s306 = sphi 0, %s305
      %s320 = sphi 0, %s306
      %s324 = sphi 0, %s324
      %s326 = sphi 0, %s324
      %s327 = sphi 0, %s326
      %s341 = sphi 0, %s327
      %s345 = sphi 0, %s345
      %s347 = sphi 0, %s345
      %s348 = sphi 0, %s347
      %s362 = sphi 0, %s348
      %s366 = sphi 0, %s366
      %s368 = sphi 0, %s366
      %s369 = sphi 0, %s368
      %s383 = sphi 0, %s369
      %s389 = sphi 0, %s391
      %s392 = sphi 0, %s389
      %s393 = sphi 0, %s392
      %s409 = sphi 0, %s393
    $region4: #{tpu_custom_call.1} parent=1 // loop_header_branch
      %36 = sbr.rel (%p34) target = $region8
    $region5: #{tpu_custom_call.1} parent=1 // loop_body
      %s38 = ssub.s32 %s33, 1
      %s39 = ssub.s32 %s33, 2
      %s40 = sadd.s32 %s33, 1
      %s41 = ssub.s32 %s33, %s40
      %p42 = scmp.eq.s32.totalorder %s41, 0
      %s44 = sadd.s32 %s43, 1
      %s45 = scalar_select %p42, %s43, %s44
      %p48 = pneg %p42
      %p49 = scmp.eq.s32.totalorder %s33, 1
      %p50 = por %p48, %p49
      %p51 = scmp.ne.s32.totalorder %s43, %s46
      %p52 = scmp.eq.s32.totalorder %s33, 0
      %p53 = por %p51, %p52
      %p54 = scmp.ne.s32.totalorder %s43, %s46
      %p55 = scmp.eq.s32.totalorder %s38, 1
      %p56 = por %p54, %p55
      %p57 = scmp.ne.s32.totalorder %s46, %s47
      %p58 = scmp.eq.s32.totalorder %s38, 0
      %p59 = por %p57, %p58
      %p60 = scmp.ne.s32.totalorder %s46, %s47
      %p61 = scmp.eq.s32.totalorder %s39, 1
      %p62 = por %p60, %p61
      %p64 = scmp.ne.s32.totalorder %s47, %s63
      %p65 = scmp.eq.s32.totalorder %s39, 0
      %p66 = por %p64, %p65
      %s67 = ssub.s32 %s33, %s40
      %p68 = scmp.eq.s32.totalorder %s67, 0
      %s70 = sadd.s32 %s69, 1
      %s71 = scalar_select %p68, %s69, %s70
      %p74 = pneg %p68
      %p75 = scmp.eq.s32.totalorder %s33, 1
      %p76 = por %p74, %p75
      %p77 = scmp.ne.s32.totalorder %s69, %s72
      %p78 = scmp.eq.s32.totalorder %s33, 0
      %p79 = por %p77, %p78
      %p80 = scmp.ne.s32.totalorder %s69, %s72
      %p81 = scmp.eq.s32.totalorder %s38, 1
      %p82 = por %p80, %p81
      %p83 = scmp.ne.s32.totalorder %s72, %s73
      %p84 = scmp.eq.s32.totalorder %s38, 0
      %p85 = por %p83, %p84
      %p86 = scmp.ne.s32.totalorder %s72, %s73
      %p87 = scmp.eq.s32.totalorder %s39, 1
      %p88 = por %p86, %p87
      %p90 = scmp.ne.s32.totalorder %s73, %s89
      %p91 = scmp.eq.s32.totalorder %s39, 0
      %p92 = por %p90, %p91
      %s94 = sadd.s32 %s93, 1
      %p97 = scmp.eq.s32.totalorder %s33, 1
      %p98 = scmp.ne.s32.totalorder %s93, %s95
      %p99 = scmp.eq.s32.totalorder %s33, 0
      %p100 = por %p98, %p99
      %p101 = scmp.ne.s32.totalorder %s93, %s95
      %p102 = scmp.eq.s32.totalorder %s38, 1
      %p103 = por %p101, %p102
      %p104 = scmp.ne.s32.totalorder %s95, %s96
      %p105 = scmp.eq.s32.totalorder %s38, 0
      %p106 = por %p104, %p105
      %p107 = scmp.ne.s32.totalorder %s95, %s96
      %p108 = scmp.eq.s32.totalorder %s39, 1
      %p109 = por %p107, %p108
      %p111 = scmp.ne.s32.totalorder %s96, %s110
      %p112 = scmp.eq.s32.totalorder %s39, 0
      %p113 = por %p111, %p112
      %s115 = sadd.s32 %s114, 1
      %p118 = scmp.eq.s32.totalorder %s33, 1
      %p119 = scmp.ne.s32.totalorder %s114, %s116
      %p120 = scmp.eq.s32.totalorder %s33, 0
      %p121 = por %p119, %p120
      %p122 = scmp.ne.s32.totalorder %s114, %s116
      %p123 = scmp.eq.s32.totalorder %s38, 1
      %p124 = por %p122, %p123
      %p125 = scmp.ne.s32.totalorder %s116, %s117
      %p126 = scmp.eq.s32.totalorder %s38, 0
      %p127 = por %p125, %p126
      %p128 = scmp.ne.s32.totalorder %s116, %s117
      %p129 = scmp.eq.s32.totalorder %s39, 1
      %p130 = por %p128, %p129
      %p132 = scmp.ne.s32.totalorder %s117, %s131
      %p133 = scmp.eq.s32.totalorder %s39, 0
      %p134 = por %p132, %p133
      %s136 = sadd.s32 %s135, 1
      %p139 = scmp.eq.s32.totalorder %s33, 1
      %p140 = scmp.ne.s32.totalorder %s135, %s137
      %p141 = scmp.eq.s32.totalorder %s33, 0
      %p142 = por %p140, %p141
      %p143 = scmp.ne.s32.totalorder %s135, %s137
      %p144 = scmp.eq.s32.totalorder %s38, 1
      %p145 = por %p143, %p144
      %p146 = scmp.ne.s32.totalorder %s137, %s138
      %p147 = scmp.eq.s32.totalorder %s38, 0
      %p148 = por %p146, %p147
      %p149 = scmp.ne.s32.totalorder %s137, %s138
      %p150 = scmp.eq.s32.totalorder %s39, 1
      %p151 = por %p149, %p150
      %p153 = scmp.ne.s32.totalorder %s138, %s152
      %p154 = scmp.eq.s32.totalorder %s39, 0
      %p155 = por %p153, %p154
      %s157 = sadd.s32 %s156, 1
      %p160 = scmp.eq.s32.totalorder %s33, 1
      %p161 = scmp.ne.s32.totalorder %s156, %s158
      %p162 = scmp.eq.s32.totalorder %s33, 0
      %p163 = por %p161, %p162
      %p164 = scmp.ne.s32.totalorder %s156, %s158
      %p165 = scmp.eq.s32.totalorder %s38, 1
      %p166 = por %p164, %p165
      %p167 = scmp.ne.s32.totalorder %s158, %s159
      %p168 = scmp.eq.s32.totalorder %s38, 0
      %p169 = por %p167, %p168
      %p170 = scmp.ne.s32.totalorder %s158, %s159
      %p171 = scmp.eq.s32.totalorder %s39, 1
      %p172 = por %p170, %p171
      %p174 = scmp.ne.s32.totalorder %s159, %s173
      %p175 = scmp.eq.s32.totalorder %s39, 0
      %p176 = por %p174, %p175
      %s178 = sadd.s32 %s177, 1
      %p181 = scmp.eq.s32.totalorder %s33, 1
      %p182 = scmp.ne.s32.totalorder %s177, %s179
      %p183 = scmp.eq.s32.totalorder %s33, 0
      %p184 = por %p182, %p183
      %p185 = scmp.ne.s32.totalorder %s177, %s179
      %p186 = scmp.eq.s32.totalorder %s38, 1
      %p187 = por %p185, %p186
      %p188 = scmp.ne.s32.totalorder %s179, %s180
      %p189 = scmp.eq.s32.totalorder %s38, 0
      %p190 = por %p188, %p189
      %p191 = scmp.ne.s32.totalorder %s179, %s180
      %p192 = scmp.eq.s32.totalorder %s39, 1
      %p193 = por %p191, %p192
      %p195 = scmp.ne.s32.totalorder %s180, %s194
      %p196 = scmp.eq.s32.totalorder %s39, 0
      %p197 = por %p195, %p196
      %s199 = sadd.s32 %s198, 1
      %p202 = scmp.eq.s32.totalorder %s33, 1
      %p203 = scmp.ne.s32.totalorder %s198, %s200
      %p204 = scmp.eq.s32.totalorder %s33, 0
      %p205 = por %p203, %p204
      %p206 = scmp.ne.s32.totalorder %s198, %s200
      %p207 = scmp.eq.s32.totalorder %s38, 1
      %p208 = por %p206, %p207
      %p209 = scmp.ne.s32.totalorder %s200, %s201
      %p210 = scmp.eq.s32.totalorder %s38, 0
      %p211 = por %p209, %p210
      %p212 = scmp.ne.s32.totalorder %s200, %s201
      %p213 = scmp.eq.s32.totalorder %s39, 1
      %p214 = por %p212, %p213
      %p216 = scmp.ne.s32.totalorder %s201, %s215
      %p217 = scmp.eq.s32.totalorder %s39, 0
      %p218 = por %p216, %p217
      %s220 = sadd.s32 %s219, 1
      %p223 = scmp.eq.s32.totalorder %s33, 1
      %p224 = scmp.ne.s32.totalorder %s219, %s221
      %p225 = scmp.eq.s32.totalorder %s33, 0
      %p226 = por %p224, %p225
      %p227 = scmp.ne.s32.totalorder %s219, %s221
      %p228 = scmp.eq.s32.totalorder %s38, 1
      %p229 = por %p227, %p228
      %p230 = scmp.ne.s32.totalorder %s221, %s222
      %p231 = scmp.eq.s32.totalorder %s38, 0
      %p232 = por %p230, %p231
      %p233 = scmp.ne.s32.totalorder %s221, %s222
      %p234 = scmp.eq.s32.totalorder %s39, 1
      %p235 = por %p233, %p234
      %p237 = scmp.ne.s32.totalorder %s222, %s236
      %p238 = scmp.eq.s32.totalorder %s39, 0
      %p239 = por %p237, %p238
      %s241 = sadd.s32 %s240, 1
      %p244 = scmp.eq.s32.totalorder %s33, 1
      %p245 = scmp.ne.s32.totalorder %s240, %s242
      %p246 = scmp.eq.s32.totalorder %s33, 0
      %p247 = por %p245, %p246
      %p248 = scmp.ne.s32.totalorder %s240, %s242
      %p249 = scmp.eq.s32.totalorder %s38, 1
      %p250 = por %p248, %p249
      %p251 = scmp.ne.s32.totalorder %s242, %s243
      %p252 = scmp.eq.s32.totalorder %s38, 0
      %p253 = por %p251, %p252
      %p254 = scmp.ne.s32.totalorder %s242, %s243
      %p255 = scmp.eq.s32.totalorder %s39, 1
      %p256 = por %p254, %p255
      %p258 = scmp.ne.s32.totalorder %s243, %s257
      %p259 = scmp.eq.s32.totalorder %s39, 0
      %p260 = por %p258, %p259
      %s262 = sadd.s32 %s261, 1
      %p265 = scmp.eq.s32.totalorder %s33, 1
      %p266 = scmp.ne.s32.totalorder %s261, %s263
      %p267 = scmp.eq.s32.totalorder %s33, 0
      %p268 = por %p266, %p267
      %p269 = scmp.ne.s32.totalorder %s261, %s263
      %p270 = scmp.eq.s32.totalorder %s38, 1
      %p271 = por %p269, %p270
      %p272 = scmp.ne.s32.totalorder %s263, %s264
      %p273 = scmp.eq.s32.totalorder %s38, 0
      %p274 = por %p272, %p273
      %p275 = scmp.ne.s32.totalorder %s263, %s264
      %p276 = scmp.eq.s32.totalorder %s39, 1
      %p277 = por %p275, %p276
      %p279 = scmp.ne.s32.totalorder %s264, %s278
      %p280 = scmp.eq.s32.totalorder %s39, 0
      %p281 = por %p279, %p280
      %s283 = sadd.s32 %s282, 1
      %p286 = scmp.eq.s32.totalorder %s33, 1
      %p287 = scmp.ne.s32.totalorder %s282, %s284
      %p288 = scmp.eq.s32.totalorder %s33, 0
      %p289 = por %p287, %p288
      %p290 = scmp.ne.s32.totalorder %s282, %s284
      %p291 = scmp.eq.s32.totalorder %s38, 1
      %p292 = por %p290, %p291
      %p293 = scmp.ne.s32.totalorder %s284, %s285
      %p294 = scmp.eq.s32.totalorder %s38, 0
      %p295 = por %p293, %p294
      %p296 = scmp.ne.s32.totalorder %s284, %s285
      %p297 = scmp.eq.s32.totalorder %s39, 1
      %p298 = por %p296, %p297
      %p300 = scmp.ne.s32.totalorder %s285, %s299
      %p301 = scmp.eq.s32.totalorder %s39, 0
      %p302 = por %p300, %p301
      %s304 = sadd.s32 %s303, 1
      %p307 = scmp.eq.s32.totalorder %s33, 1
      %p308 = scmp.ne.s32.totalorder %s303, %s305
      %p309 = scmp.eq.s32.totalorder %s33, 0
      %p310 = por %p308, %p309
      %p311 = scmp.ne.s32.totalorder %s303, %s305
      %p312 = scmp.eq.s32.totalorder %s38, 1
      %p313 = por %p311, %p312
      %p314 = scmp.ne.s32.totalorder %s305, %s306
      %p315 = scmp.eq.s32.totalorder %s38, 0
      %p316 = por %p314, %p315
      %p317 = scmp.ne.s32.totalorder %s305, %s306
      %p318 = scmp.eq.s32.totalorder %s39, 1
      %p319 = por %p317, %p318
      %p321 = scmp.ne.s32.totalorder %s306, %s320
      %p322 = scmp.eq.s32.totalorder %s39, 0
      %p323 = por %p321, %p322
      %s325 = sadd.s32 %s324, 1
      %p328 = scmp.eq.s32.totalorder %s33, 1
      %p329 = scmp.ne.s32.totalorder %s324, %s326
      %p330 = scmp.eq.s32.totalorder %s33, 0
      %p331 = por %p329, %p330
      %p332 = scmp.ne.s32.totalorder %s324, %s326
      %p333 = scmp.eq.s32.totalorder %s38, 1
      %p334 = por %p332, %p333
      %p335 = scmp.ne.s32.totalorder %s326, %s327
      %p336 = scmp.eq.s32.totalorder %s38, 0
      %p337 = por %p335, %p336
      %p338 = scmp.ne.s32.totalorder %s326, %s327
      %p339 = scmp.eq.s32.totalorder %s39, 1
      %p340 = por %p338, %p339
      %p342 = scmp.ne.s32.totalorder %s327, %s341
      %p343 = scmp.eq.s32.totalorder %s39, 0
      %p344 = por %p342, %p343
      %s346 = sadd.s32 %s345, 1
      %p349 = scmp.eq.s32.totalorder %s33, 1
      %p350 = scmp.ne.s32.totalorder %s345, %s347
      %p351 = scmp.eq.s32.totalorder %s33, 0
      %p352 = por %p350, %p351
      %p353 = scmp.ne.s32.totalorder %s345, %s347
      %p354 = scmp.eq.s32.totalorder %s38, 1
      %p355 = por %p353, %p354
      %p356 = scmp.ne.s32.totalorder %s347, %s348
      %p357 = scmp.eq.s32.totalorder %s38, 0
      %p358 = por %p356, %p357
      %p359 = scmp.ne.s32.totalorder %s347, %s348
      %p360 = scmp.eq.s32.totalorder %s39, 1
      %p361 = por %p359, %p360
      %p363 = scmp.ne.s32.totalorder %s348, %s362
      %p364 = scmp.eq.s32.totalorder %s39, 0
      %p365 = por %p363, %p364
      %s367 = sadd.s32 %s366, 1
      %p370 = scmp.eq.s32.totalorder %s33, 1
      %p371 = scmp.ne.s32.totalorder %s366, %s368
      %p372 = scmp.eq.s32.totalorder %s33, 0
      %p373 = por %p371, %p372
      %p374 = scmp.ne.s32.totalorder %s366, %s368
      %p375 = scmp.eq.s32.totalorder %s38, 1
      %p376 = por %p374, %p375
      %p377 = scmp.ne.s32.totalorder %s368, %s369
      %p378 = scmp.eq.s32.totalorder %s38, 0
      %p379 = por %p377, %p378
      %p380 = scmp.ne.s32.totalorder %s368, %s369
      %p381 = scmp.eq.s32.totalorder %s39, 1
      %p382 = por %p380, %p381
      %p384 = scmp.ne.s32.totalorder %s369, %s383
      %p385 = scmp.eq.s32.totalorder %s39, 0
      %p386 = por %p384, %p385
      %s387 = ssub.s32 %s33, %s40
      %p388 = scmp.eq.s32.totalorder %s387, 0
      %s390 = sadd.s32 %s389, 1
      %s391 = scalar_select %p388, %s389, %s390
      %p394 = pneg %p388
      %p395 = scmp.eq.s32.totalorder %s33, 1
      %p396 = por %p394, %p395
      %p397 = scmp.ne.s32.totalorder %s389, %s392
      %p398 = scmp.eq.s32.totalorder %s33, 0
      %p399 = por %p397, %p398
      %p400 = scmp.ne.s32.totalorder %s389, %s392
      %p401 = scmp.eq.s32.totalorder %s38, 1
      %p402 = por %p400, %p401
      %p403 = scmp.ne.s32.totalorder %s392, %s393
      %p404 = scmp.eq.s32.totalorder %s38, 0
      %p405 = por %p403, %p404
      %p406 = scmp.ne.s32.totalorder %s392, %s393
      %p407 = scmp.eq.s32.totalorder %s39, 1
      %p408 = por %p406, %p407
      %p410 = scmp.ne.s32.totalorder %s393, %s409
      %p411 = scmp.eq.s32.totalorder %s39, 0
      %p412 = por %p410, %p411
      %p413 = scmp.le.s32.totalorder 1, %s33
      %p414 = scmp.lt.s32.totalorder %s33, 3
      %p415 = pnand %p413, %p414
      %p416 = pneg %p415
      // Predicated region
      $region9: #{tpu_custom_call.1} parent=5 // pred_check
        _
      $region10: #{tpu_custom_call.1} parent=5 // pred_check_branch
        %418 = sbr.rel (%p415) target = $region12
      $region11: #{tpu_custom_call.1} parent=5 // pred_region
        %s419 = ssub.s32 %s33, 1
        // Predicated region
        $region13: #{tpu_custom_call.1} parent=11 // pred_check
          %p420 = pneg %p106
        $region14: #{tpu_custom_call.1} parent=11 // pred_check_branch
          %422 = sbr.rel (%p420) target = $region16
        $region15: #{tpu_custom_call.1} parent=11 // pred_region
          %s424 = ssub.s32 3072, 3072
          %425 = vsyncadd [#allocation6], %s424
          %s426 = sshll.u32 [#allocation7], 4
          %s427 = int_to_ptr.vmem [resolvable:$true] %s426
          %432 = dma.hbm_to_vmem [thread:$0]  %s2, 3072, %s427, [#allocation6], 192, 192, 12
        $region16: #{tpu_custom_call.1} parent=11 // pred_fallthru
          _
        // Predicated region
        $region17: #{tpu_custom_call.1} parent=11 // pred_check
          %p433 = pneg %p127
        $region18: #{tpu_custom_call.1} parent=11 // pred_check_branch
          %435 = sbr.rel (%p433) target = $region20
        $region19: #{tpu_custom_call.1} parent=11 // pred_region
          _
        $region20: #{tpu_custom_call.1} parent=11 // pred_fallthru
          _
        // Predicated region
        $region21: #{tpu_custom_call.1} parent=11 // pred_check
          %p436 = pneg %p148
        $region22: #{tpu_custom_call.1} parent=11 // pred_check_branch
          %438 = sbr.rel (%p436) target = $region24
        $region23: #{tpu_custom_call.1} parent=11 // pred_region
          %s440 = ssub.s32 1024, 1024
          %441 = vsyncadd [#allocation9], %s440
          %s442 = sshll.u32 [#allocation8], 4
          %s443 = int_to_ptr.vmem [resolvable:$true] %s442
          %448 = dma.hbm_to_vmem [thread:$0]  %s4, 1024, %s443, [#allocation9], 64, 64, 4
        $region24: #{tpu_custom_call.1} parent=11 // pred_fallthru
          _
        // Predicated region
        $region25: #{tpu_custom_call.1} parent=11 // pred_check
          %p449 = pneg %p169
        $region26: #{tpu_custom_call.1} parent=11 // pred_check_branch
          %451 = sbr.rel (%p449) target = $region28
        $region27: #{tpu_custom_call.1} parent=11 // pred_region
          _
        $region28: #{tpu_custom_call.1} parent=11 // pred_fallthru
          _
        // Predicated region
        $region29: #{tpu_custom_call.1} parent=11 // pred_check
          %p452 = pneg %p190
        $region30: #{tpu_custom_call.1} parent=11 // pred_check_branch
          %454 = sbr.rel (%p452) target = $region32
        $region31: #{tpu_custom_call.1} parent=11 // pred_region
          _
        $region32: #{tpu_custom_call.1} parent=11 // pred_fallthru
          _
        // Predicated region
        $region33: #{tpu_custom_call.1} parent=11 // pred_check
          %p455 = pneg %p211
        $region34: #{tpu_custom_call.1} parent=11 // pred_check_branch
          %457 = sbr.rel (%p455) target = $region36
        $region35: #{tpu_custom_call.1} parent=11 // pred_region
          _
        $region36: #{tpu_custom_call.1} parent=11 // pred_fallthru
          _
        // Predicated region
        $region37: #{tpu_custom_call.1} parent=11 // pred_check
          %p458 = pneg %p232
        $region38: #{tpu_custom_call.1} parent=11 // pred_check_branch
          %460 = sbr.rel (%p458) target = $region40
        $region39: #{tpu_custom_call.1} parent=11 // pred_region
          %s462 = ssub.s32 4096, 4096
          %463 = vsyncadd [#allocation9], %s462
          %s464 = sshll.u32 [#allocation10], 4
          %s465 = int_to_ptr.vmem [resolvable:$true] %s464
          %470 = dma.hbm_to_vmem [thread:$0]  %s8, 4096, %s465, [#allocation9], 256, 256, 16
        $region40: #{tpu_custom_call.1} parent=11 // pred_fallthru
          _
        // Predicated region
        $region41: #{tpu_custom_call.1} parent=11 // pred_check
          %p471 = pneg %p253
        $region42: #{tpu_custom_call.1} parent=11 // pred_check_branch
          %473 = sbr.rel (%p471) target = $region44
        $region43: #{tpu_custom_call.1} parent=11 // pred_region
          _
        $region44: #{tpu_custom_call.1} parent=11 // pred_fallthru
          _
        // Predicated region
        $region45: #{tpu_custom_call.1} parent=11 // pred_check
          %p474 = pneg %p274
        $region46: #{tpu_custom_call.1} parent=11 // pred_check_branch
          %476 = sbr.rel (%p474) target = $region48
        $region47: #{tpu_custom_call.1} parent=11 // pred_region
          %s478 = ssub.s32 4096, 4096
          %479 = vsyncadd [#allocation12], %s478
          %s480 = sshll.u32 [#allocation11], 4
          %s481 = int_to_ptr.vmem [resolvable:$true] %s480
          %486 = dma.hbm_to_vmem [thread:$0]  %s10, 4096, %s481, [#allocation12], 64, 64, 4
        $region48: #{tpu_custom_call.1} parent=11 // pred_fallthru
          _
        // Predicated region
        $region49: #{tpu_custom_call.1} parent=11 // pred_check
          %p487 = pneg %p295
        $region50: #{tpu_custom_call.1} parent=11 // pred_check_branch
          %489 = sbr.rel (%p487) target = $region52
        $region51: #{tpu_custom_call.1} parent=11 // pred_region
          _
        $region52: #{tpu_custom_call.1} parent=11 // pred_fallthru
          _
        // Predicated region
        $region53: #{tpu_custom_call.1} parent=11 // pred_check
          %p490 = pneg %p316
        $region54: #{tpu_custom_call.1} parent=11 // pred_check_branch
          %492 = sbr.rel (%p490) target = $region56
        $region55: #{tpu_custom_call.1} parent=11 // pred_region
          _
        $region56: #{tpu_custom_call.1} parent=11 // pred_fallthru
          _
        // Predicated region
        $region57: #{tpu_custom_call.1} parent=11 // pred_check
          %p493 = pneg %p337
        $region58: #{tpu_custom_call.1} parent=11 // pred_check_branch
          %495 = sbr.rel (%p493) target = $region60
        $region59: #{tpu_custom_call.1} parent=11 // pred_region
          _
        $region60: #{tpu_custom_call.1} parent=11 // pred_fallthru
          _
        // Predicated region
        $region61: #{tpu_custom_call.1} parent=11 // pred_check
          %p496 = pneg %p358
        $region62: #{tpu_custom_call.1} parent=11 // pred_check_branch
          %498 = sbr.rel (%p496) target = $region64
        $region63: #{tpu_custom_call.1} parent=11 // pred_region
          _
        $region64: #{tpu_custom_call.1} parent=11 // pred_fallthru
          _
        // Predicated region
        $region65: #{tpu_custom_call.1} parent=11 // pred_check
          %p499 = pneg %p379
        $region66: #{tpu_custom_call.1} parent=11 // pred_check_branch
          %501 = sbr.rel (%p499) target = $region68
        $region67: #{tpu_custom_call.1} parent=11 // pred_region
          _
        $region68: #{tpu_custom_call.1} parent=11 // pred_fallthru
          _
      $region12: #{tpu_custom_call.1} parent=5 // pred_fallthru
        _
      %p502 = scmp.lt.s32.totalorder %s33, 2
      // Predicated region
      $region69: #{tpu_custom_call.1} parent=5 // pred_check
        %p503 = pneg %p502
      $region70: #{tpu_custom_call.1} parent=5 // pred_check_branch
        %505 = sbr.rel (%p503) target = $region72
      $region71: #{tpu_custom_call.1} parent=5 // pred_region
        // Predicated region
        $region73: #{tpu_custom_call.1} parent=71 // pred_check
          %p506 = pneg %p53
        $region74: #{tpu_custom_call.1} parent=71 // pred_check_branch
          %508 = sbr.rel (%p506) target = $region76
        $region75: #{tpu_custom_call.1} parent=71 // pred_region
          %s509 = sand.u32 %s43, 1
          %s510 = scalar_lea.sflag [#allocation3], %s509
          %s511 = sand.u32 %s43, 1
          %s512 = smul.addr %s511, 8
          %s513 = scalar_lea.vmem [#allocation2], %s512
          %s515 = ssub.s32 128, 128
          %516 = vsyncadd %s510, %s515
          %s517 = smul.addr %s33, 128
          %s518 = scalar_lea.hbm %s0, %s517
          %s520 = sshll.u32 %s513, 4
          %s521 = int_to_ptr.vmem [resolvable:$true] %s520
          %523 = dma.hbm_to_vmem [thread:$0]  %s518, 128, %s521, %s510
        $region76: #{tpu_custom_call.1} parent=71 // pred_fallthru
          _
        // Predicated region
        $region77: #{tpu_custom_call.1} parent=71 // pred_check
          %p524 = pneg %p79
        $region78: #{tpu_custom_call.1} parent=71 // pred_check_branch
          %526 = sbr.rel (%p524) target = $region80
        $region79: #{tpu_custom_call.1} parent=71 // pred_region
          %s527 = sand.u32 %s33, 1
          %s528 = scalar_lea.sflag [#allocation6], %s527
          %s529 = sand.u32 %s69, 1
          %s530 = scalar_lea.vmem [#allocation5], %s529
          %s532 = ssub.s32 16, 16
          %533 = vsyncadd %s528, %s532
          %s534 = smul.addr %s33, 16
          %s535 = scalar_lea.hbm %s1, %s534
          %s537 = sshll.u32 %s530, 4
          %s538 = int_to_ptr.vmem [resolvable:$true] %s537
          %540 = dma.hbm_to_vmem [thread:$0]  %s535, 16, %s538, %s528
        $region80: #{tpu_custom_call.1} parent=71 // pred_fallthru
          _
      $region72: #{tpu_custom_call.1} parent=5 // pred_fallthru
        _
      %p541 = scmp.le.s32.totalorder 1, %s33
      %p542 = scmp.lt.s32.totalorder %s33, 3
      %p543 = pnand %p541, %p542
      %p544 = pneg %p543
      // Predicated region
      $region81: #{tpu_custom_call.1} parent=5 // pred_check
        _
      $region82: #{tpu_custom_call.1} parent=5 // pred_check_branch
        %546 = sbr.rel (%p543) target = $region84
      $region83: #{tpu_custom_call.1} parent=5 // pred_region
        %s547 = ssub.s32 %s33, 1
        %s548 = sand.u32 %s46, 1
        %s549 = scalar_lea.sflag [#allocation3], %s548
        %s550 = sand.u32 %s46, 1
        %s551 = smul.addr %s550, 8
        %s552 = scalar_lea.vmem [#allocation2], %s551
        // Predicated region
        $region85: #{tpu_custom_call.1} parent=83 // pred_check
          %p553 = pneg %p59
        $region86: #{tpu_custom_call.1} parent=83 // pred_check_branch
          %555 = sbr.rel (%p553) target = $region88
        $region87: #{tpu_custom_call.1} parent=83 // pred_region
          %556 = dma.done %s549, 128
        $region88: #{tpu_custom_call.1} parent=83 // pred_fallthru
          _
        %s557 = sand.u32 %s38, 1
        %s558 = scalar_lea.sflag [#allocation6], %s557
        %s559 = sand.u32 %s72, 1
        %s560 = scalar_lea.vmem [#allocation5], %s559
        // Predicated region
        $region89: #{tpu_custom_call.1} parent=83 // pred_check
          %p561 = pneg %p85
        $region90: #{tpu_custom_call.1} parent=83 // pred_check_branch
          %563 = sbr.rel (%p561) target = $region92
        $region91: #{tpu_custom_call.1} parent=83 // pred_region
          %564 = dma.done %s558, 16
        $region92: #{tpu_custom_call.1} parent=83 // pred_fallthru
          _
        // Predicated region
        $region93: #{tpu_custom_call.1} parent=83 // pred_check
          %p565 = pneg %p106
        $region94: #{tpu_custom_call.1} parent=83 // pred_check_branch
          %567 = sbr.rel (%p565) target = $region96
        $region95: #{tpu_custom_call.1} parent=83 // pred_region
          %568 = dma.done [#allocation6], 3072
        $region96: #{tpu_custom_call.1} parent=83 // pred_fallthru
          _
        // Predicated region
        $region97: #{tpu_custom_call.1} parent=83 // pred_check
          %p569 = pneg %p148
        $region98: #{tpu_custom_call.1} parent=83 // pred_check_branch
          %571 = sbr.rel (%p569) target = $region100
        $region99: #{tpu_custom_call.1} parent=83 // pred_region
          %572 = dma.done [#allocation9], 1024
        $region100: #{tpu_custom_call.1} parent=83 // pred_fallthru
          _
        // Predicated region
        $region101: #{tpu_custom_call.1} parent=83 // pred_check
          %p573 = pneg %p232
        $region102: #{tpu_custom_call.1} parent=83 // pred_check_branch
          %575 = sbr.rel (%p573) target = $region104
        $region103: #{tpu_custom_call.1} parent=83 // pred_region
          %576 = dma.done [#allocation9], 4096
        $region104: #{tpu_custom_call.1} parent=83 // pred_fallthru
          _
        // Predicated region
        $region105: #{tpu_custom_call.1} parent=83 // pred_check
          %p577 = pneg %p274
        $region106: #{tpu_custom_call.1} parent=83 // pred_check_branch
          %579 = sbr.rel (%p577) target = $region108
        $region107: #{tpu_custom_call.1} parent=83 // pred_region
          %580 = dma.done [#allocation12], 4096
        $region108: #{tpu_custom_call.1} parent=83 // pred_fallthru
          _
        %s581 = sand.u32 %s46, 1
        %s582 = scalar_lea.sflag [#allocation3], %s581
        %s583 = sand.u32 %s46, 1
        %s584 = smul.addr %s583, 8
        %s585 = scalar_lea.vmem [#allocation2], %s584
        %p586 = pneg %p59
        %p587 = pneg %p56
        %s588 = sand.u32 %s38, 1
        %s589 = scalar_lea.sflag [#allocation6], %s588
        %s590 = sand.u32 %s72, 1
        %s591 = scalar_lea.vmem [#allocation5], %s590
        %p592 = pneg %p85
        %p593 = pneg %p82
        %p594 = pneg %p106
        %p595 = pneg %p103
        %p596 = pneg %p127
        %p597 = pneg %p124
        %p598 = pneg %p148
        %p599 = pneg %p145
        %p600 = pneg %p169
        %p601 = pneg %p166
        %p602 = pneg %p190
        %p603 = pneg %p187
        %p604 = pneg %p211
        %p605 = pneg %p208
        %p606 = pneg %p232
        %p607 = pneg %p229
        %p608 = pneg %p253
        %p609 = pneg %p250
        %p610 = pneg %p274
        %p611 = pneg %p271
        %p612 = pneg %p295
        %p613 = pneg %p292
        %p614 = pneg %p316
        %p615 = pneg %p313
        %p616 = pneg %p337
        %p617 = pneg %p334
        %p618 = pneg %p358
        %p619 = pneg %p355
        %p620 = pneg %p379
        %p621 = pneg %p376
        %p622 = pneg %p405
        %p623 = pneg %p402
        %s624 = sand.u32 %s392, 1
        %s625 = scalar_lea.sflag [#allocation4], %s624
        %s626 = sand.u32 %s392, 1
        %s627 = smul.addr %s626, 8
        %s628 = scalar_lea.vmem [#allocation13], %s627
        %v630 = vld [vmem:[%s552] sm:$0xff]
        %v631 = vld [vmem:[%s14] sm:$0x1]
        %v632 = vld [vmem:[%s15] sm:$0x1]
        %633 = vadd.xlane.f32.xlu0 %v630
        %v634 = vpop.xlane.xlu0 %633
        %v635 = vrcp.pop 128.0
        %v636 = vmul.f32 %v634, %v635
        %v637 = vsub.f32 %v630, %v636
        %v638 = vmul.f32 %v637, %v637
        %639 = vadd.xlane.f32.xlu0 %v638
        %v640 = vpop.xlane.xlu0 %639
        %v641 = vmul.f32 %v640, %v635
        %v642 = vadd.f32 %v641, 1e-12
        %v643 = vrsqrt.pop %v642
        %v644 = vmul.f32 %v637, %v643
        %v646 = vlaneseq
        %v647 = vshrl.u32 %v646, 7
        %v648 = vsub.s32 0, %v647
        %v649 = vrot.slane %v631, %v648
        %v651 = vmul.f32 %v644, %v649
        %v653 = vlaneseq
        %v654 = vshrl.u32 %v653, 7
        %v655 = vsub.s32 0, %v654
        %v656 = vrot.slane %v632, %v655
        %v658 = vadd.f32 %v651, %v656
        %v659 = vpack.c.bf16 %v658, %v658
        %v660 = vld [vmem:[#allocation7] sm:$0xff]
        %v661 = vld [vmem:[#allocation7 + $0x8] sm:$0xf]
        %v662 = vld [vmem:[#allocation7 + $0xc] sm:$0xff]
        %v663 = vld [vmem:[#allocation7 + $0x14] sm:$0xf]
        %v664 = vld [vmem:[#allocation7 + $0x18] sm:$0xff]
        %v665 = vld [vmem:[#allocation7 + $0x20] sm:$0xf]
        %v666 = vld [vmem:[#allocation7 + $0x24] sm:$0xff]
        %v667 = vld [vmem:[#allocation7 + $0x2c] sm:$0xf]
        %v668 = vld [vmem:[#allocation7 + $0x30] sm:$0xff]
        %v669 = vld [vmem:[#allocation7 + $0x38] sm:$0xf]
        %v670 = vld [vmem:[#allocation7 + $0x3c] sm:$0xff]
        %v671 = vld [vmem:[#allocation7 + $0x44] sm:$0xf]
        %v672 = vld [vmem:[#allocation7 + $0x48] sm:$0xff]
        %v673 = vld [vmem:[#allocation7 + $0x50] sm:$0xf]
        %v674 = vld [vmem:[#allocation7 + $0x54] sm:$0xff]
        %v675 = vld [vmem:[#allocation7 + $0x5c] sm:$0xf]
        %v676 = vld [vmem:[#allocation7 + $0x60] sm:$0xff]
        %v677 = vld [vmem:[#allocation7 + $0x68] sm:$0xf]
        %v678 = vld [vmem:[#allocation7 + $0x6c] sm:$0xff]
        %v679 = vld [vmem:[#allocation7 + $0x74] sm:$0xf]
        %v680 = vld [vmem:[#allocation7 + $0x78] sm:$0xff]
        %v681 = vld [vmem:[#allocation7 + $0x80] sm:$0xf]
        %v682 = vld [vmem:[#allocation7 + $0x84] sm:$0xff]
        %v683 = vld [vmem:[#allocation7 + $0x8c] sm:$0xf]
        %v684 = vld [vmem:[#allocation7 + $0x90] sm:$0xff]
        %v685 = vld [vmem:[#allocation7 + $0x98] sm:$0xf]
        %v686 = vld [vmem:[#allocation7 + $0x9c] sm:$0xff]
        %v687 = vld [vmem:[#allocation7 + $0xa4] sm:$0xf]
        %v688 = vld [vmem:[#allocation7 + $0xa8] sm:$0xff]
        %v689 = vld [vmem:[#allocation7 + $0xb0] sm:$0xf]
        %v690 = vld [vmem:[#allocation7 + $0xb4] sm:$0xff]
        %v691 = vld [vmem:[#allocation7 + $0xbc] sm:$0xf]
        %v692 = vld [vmem:[%s3] sm:$0x7]
        %v694 = vlaneseq
        %v695 = vshrl.u32 %v694, 7
        %v696 = vsub.s32 0, %v695
        %v697 = vrot.slane %v692, %v696
        %v698 = vlaneseq
        %v699 = vshrl.u32 %v698, 7
        %v700 = vsub.s32 1, %v699
        %v701 = vrot.slane %v692, %v700
        %v702 = vlaneseq
        %v703 = vshrl.u32 %v702, 7
        %v704 = vsub.s32 2, %v703
        %v705 = vrot.slane %v692, %v704
        %v741 = vunpack.c.l.b16 %v660
        %v742 = vunpack.c.h.b16 %v660
        %v743 = vunpack.c.l.b16 %v661
        %v744 = vunpack.c.l.b16 %v662
        %v745 = vunpack.c.h.b16 %v662
        %v746 = vunpack.c.l.b16 %v663
        %v747 = vunpack.c.l.b16 %v664
        %v748 = vunpack.c.h.b16 %v664
        %v749 = vunpack.c.l.b16 %v665
        %v750 = vunpack.c.l.b16 %v666
        %v751 = vunpack.c.h.b16 %v666
        %v752 = vunpack.c.l.b16 %v667
        %v753 = vunpack.c.l.b16 %v668
        %v754 = vunpack.c.h.b16 %v668
        %v755 = vunpack.c.l.b16 %v669
        %v756 = vunpack.c.l.b16 %v670
        %v757 = vunpack.c.h.b16 %v670
        %v758 = vunpack.c.l.b16 %v671
        %v759 = vunpack.c.l.b16 %v672
        %v760 = vunpack.c.h.b16 %v672
        %v761 = vunpack.c.l.b16 %v673
        %v762 = vunpack.c.l.b16 %v674
        %v763 = vunpack.c.h.b16 %v674
        %v764 = vunpack.c.l.b16 %v675
        %v765 = vunpack.c.l.b16 %v676
        %v766 = vunpack.c.h.b16 %v676
        %v767 = vunpack.c.l.b16 %v677
        %v768 = vunpack.c.l.b16 %v678
        %v769 = vunpack.c.h.b16 %v678
        %v770 = vunpack.c.l.b16 %v679
        %v771 = vunpack.c.l.b16 %v680
        %v772 = vunpack.c.h.b16 %v680
        %v773 = vunpack.c.l.b16 %v681
        %v774 = vunpack.c.l.b16 %v682
        %v775 = vunpack.c.h.b16 %v682
        %v776 = vunpack.c.l.b16 %v683
        %v777 = vunpack.c.l.b16 %v684
        %v778 = vunpack.c.h.b16 %v684
        %v779 = vunpack.c.l.b16 %v685
        %v780 = vunpack.c.l.b16 %v686
        %v781 = vunpack.c.h.b16 %v686
        %v782 = vunpack.c.l.b16 %v687
        %v783 = vunpack.c.l.b16 %v688
        %v784 = vunpack.c.h.b16 %v688
        %v785 = vunpack.c.l.b16 %v689
        %v786 = vunpack.c.l.b16 %v690
        %v787 = vunpack.c.h.b16 %v690
        %v788 = vunpack.c.l.b16 %v691
        %v789 = vpack.c.b16 %v744, %v741
        %v790 = vpack.c.b16 %v745, %v742
        %v791 = vpack.c.b16 %v746, %v743
        %v792 = vpack.c.b16 %v750, %v747
        %v793 = vpack.c.b16 %v751, %v748
        %v794 = vpack.c.b16 %v752, %v749
        %v795 = vpack.c.b16 %v756, %v753
        %v796 = vpack.c.b16 %v757, %v754
        %v797 = vpack.c.b16 %v758, %v755
        %v798 = vpack.c.b16 %v762, %v759
        %v799 = vpack.c.b16 %v763, %v760
        %v800 = vpack.c.b16 %v764, %v761
        %v801 = vpack.c.b16 %v768, %v765
        %v802 = vpack.c.b16 %v769, %v766
        %v803 = vpack.c.b16 %v770, %v767
        %v804 = vpack.c.b16 %v774, %v771
        %v805 = vpack.c.b16 %v775, %v772
        %v806 = vpack.c.b16 %v776, %v773
        %v807 = vpack.c.b16 %v780, %v777
        %v808 = vpack.c.b16 %v781, %v778
        %v809 = vpack.c.b16 %v782, %v779
        %v810 = vpack.c.b16 %v786, %v783
        %v811 = vpack.c.b16 %v787, %v784
        %v812 = vpack.c.b16 %v788, %v785
        %837 = vmatprep.subr.bf16.mxu0 %v790
        %838 = vmatpush1.bf16.msra.mxu0 %v789
        %839 = vmatprep.subr.bf16.mxu0 %v793
        %840 = vmatpush1.bf16.msra.mxu0 %v792
        %841 = vmatprep.subr.bf16.mxu0 %v796
        %842 = vmatpush1.bf16.msra.mxu0 %v795
        %843 = vmatprep.subr.bf16.mxu0 %v799
        %844 = vmatpush1.bf16.msra.mxu0 %v798
        %845 = vmatprep.subr.bf16.mxu0 %v802
        %846 = vmatpush1.bf16.msra.mxu0 %v801
        %847 = vmatprep.subr.bf16.mxu0 %v805
        %848 = vmatpush1.bf16.msra.mxu0 %v804
        %849 = vmatprep.subr.bf16.mxu0 %v808
        %850 = vmatpush1.bf16.msra.mxu0 %v807
        %851 = vmatprep.subr.bf16.mxu0 %v811
        %852 = vmatpush1.bf16.msra.mxu0 %v810
        %853 = vmatprep.subr.bf16.mxu0 0
        %854 = vmatpush1.bf16.msra.mxu0 0
        %855 = vmatprep.subr.bf16.mxu0 0
        %856 = vmatpush1.bf16.msra.mxu0 0
        %857 = vmatprep.subr.bf16.mxu0 0
        %858 = vmatpush1.bf16.msra.mxu0 0
        %859 = vmatprep.subr.bf16.mxu0 0
        %860 = vmatpush1.bf16.msra.mxu0 0
        %861 = vmatprep.subr.bf16.mxu0 0
        %862 = vmatpush1.bf16.msra.mxu0 0
        %863 = vmatprep.subr.bf16.mxu0 0
        %864 = vmatpush1.bf16.msra.mxu0 0
        %865 = vmatprep.subr.bf16.mxu0 0
        %866 = vmatpush1.bf16.msra.mxu0 0
        %867 = vmatprep.subr.bf16.mxu0 0
        %868 = vmatpush1.bf16.msra.mxu0 0
        %869 = vmatprep.mubr.bf16.mxu0 0
        %870 = vmatmul.mubr.bf16.gmra.mrb[0].mxu0 %v659
        %v871 = vpop.f32.mrb[0].mxu0
        %v872 = vadd.f32 %v697, %v871
        %v873 = vpop.f32.mrb[0].mxu0
        %v874 = vadd.f32 %v701, %v873
        %v875 = vpop.f32.mrb[0].mxu0
        %v876 = vpop.f32.mrb[0].mxu0
        %877 = vdwg.mxu0
        %878 = vmatprep.subr.bf16.mxu0 0
        %879 = vmatpush1.bf16.msra.mxu0 %v791
        %880 = vmatprep.subr.bf16.mxu0 0
        %881 = vmatpush1.bf16.msra.mxu0 %v794
        %882 = vmatprep.subr.bf16.mxu0 0
        %883 = vmatpush1.bf16.msra.mxu0 %v797
        %884 = vmatprep.subr.bf16.mxu0 0
        %885 = vmatpush1.bf16.msra.mxu0 %v800
        %886 = vmatprep.subr.bf16.mxu0 0
        %887 = vmatpush1.bf16.msra.mxu0 %v803
        %888 = vmatprep.subr.bf16.mxu0 0
        %889 = vmatpush1.bf16.msra.mxu0 %v806
        %890 = vmatprep.subr.bf16.mxu0 0
        %891 = vmatpush1.bf16.msra.mxu0 %v809
        %892 = vmatprep.subr.bf16.mxu0 0
        %893 = vmatpush1.bf16.msra.mxu0 %v812
        %894 = vmatprep.subr.bf16.mxu0 0
        %895 = vmatpush1.bf16.msra.mxu0 0
        %896 = vmatprep.subr.bf16.mxu0 0
        %897 = vmatpush1.bf16.msra.mxu0 0
        %898 = vmatprep.subr.bf16.mxu0 0
        %899 = vmatpush1.bf16.msra.mxu0 0
        %900 = vmatprep.subr.bf16.mxu0 0
        %901 = vmatpush1.bf16.msra.mxu0 0
        %902 = vmatprep.subr.bf16.mxu0 0
        %903 = vmatpush1.bf16.msra.mxu0 0
        %904 = vmatprep.subr.bf16.mxu0 0
        %905 = vmatpush1.bf16.msra.mxu0 0
        %906 = vmatprep.subr.bf16.mxu0 0
        %907 = vmatpush1.bf16.msra.mxu0 0
        %908 = vmatprep.subr.bf16.mxu0 0
        %909 = vmatpush1.bf16.msra.mxu0 0
        %910 = vmatprep.mubr.bf16.mxu0 0
        %911 = vmatmul.mubr.bf16.gmra.mrb[0].mxu0 %v659
        %v912 = vpop.f32.mrb[0].mxu0
        %v913 = vadd.f32 %v705, %v912
        %v914 = vpop.f32.mrb[0].mxu0
        %v915 = vpop.f32.mrb[0].mxu0
        %v916 = vpop.f32.mrb[0].mxu0
        %917 = vdwg.mxu0
        %v918 = vld [vmem:[%s560] sm:$0x1]
        %v919 = vpack.c.bf16 %v872, %v872
        %v920 = vpack.c.bf16 %v874, %v874
        %v921 = vpack.c.bf16 %v913, %v913
        %v923 = vlaneseq
        %v924 = vshrl.u32 %v923, 7
        %v925 = vsub.s32 0, %v924
        %v926 = vrot.slane %v918, %v925
        %vm928 = vcmask 261120
        %v930 = vsel %vm928, %v919, 0
        %v933 = vsel %vm928, %v920, 0
        %935 = vmatprep.subr.bf16.mxu0 0
        %936 = vmatpush1.bf16.xpose.msra.mxu0 %v933
        %937 = vmatprep.subr.bf16.mxu0 0
        %938 = vmatpush1.bf16.xpose.msra.mxu0 0
        %939 = vmatprep.subr.bf16.mxu0 0
        %940 = vmatpush1.bf16.xpose.msra.mxu0 0
        %941 = vmatprep.subr.bf16.mxu0 0
        %942 = vmatpush1.bf16.xpose.msra.mxu0 0
        %943 = vmatprep.subr.bf16.mxu0 0
        %944 = vmatpush1.bf16.xpose.msra.mxu0 0
        %945 = vmatprep.subr.bf16.mxu0 0
        %946 = vmatpush1.bf16.xpose.msra.mxu0 0
        %947 = vmatprep.subr.bf16.mxu0 0
        %948 = vmatpush1.bf16.xpose.msra.mxu0 0
        %949 = vmatprep.subr.bf16.mxu0 0
        %950 = vmatpush1.bf16.xpose.msra.mxu0 0
        %951 = vmatprep.subr.bf16.mxu0 0
        %952 = vmatpush1.bf16.xpose.msra.mxu0 0
        %953 = vmatprep.subr.bf16.mxu0 0
        %954 = vmatpush1.bf16.xpose.msra.mxu0 0
        %955 = vmatprep.subr.bf16.mxu0 0
        %956 = vmatpush1.bf16.xpose.msra.mxu0 0
        %957 = vmatprep.subr.bf16.mxu0 0
        %958 = vmatpush1.bf16.xpose.msra.mxu0 0
        %959 = vmatprep.subr.bf16.mxu0 0
        %960 = vmatpush1.bf16.xpose.msra.mxu0 0
        %961 = vmatprep.subr.bf16.mxu0 0
        %962 = vmatpush1.bf16.xpose.msra.mxu0 0
        %963 = vmatprep.subr.bf16.mxu0 0
        %964 = vmatpush1.bf16.xpose.msra.mxu0 0
        %965 = vmatprep.subr.bf16.mxu0 0
        %966 = vmatpush1.bf16.xpose.msra.mxu0 0
        %967 = vmatprep.mubr.bf16.mxu0 0
        %968 = vmatmul.mubr.bf16.gmra.mrb[0].mxu0 %v930
        %v969 = vpop.f32.mrb[0].mxu0
        %v970 = vadd.f32 %v926, %v969
        %v971 = vpop.f32.mrb[0].mxu0
        %v972 = vpop.f32.mrb[0].mxu0
        %v973 = vpop.f32.mrb[0].mxu0
        %974 = vdwg.mxu0
        %vm975 = vcmask 64512
        %v976 = vsel %vm975, %v970, -inf
        %977 = vmax.xlane.f32.xlu0 %v976
        %v978 = vpop.xlane.xlu0 %977
        %v979 = vsub.f32 %v970, %v978
        %v980 = vmul.f32 %v979, 1.442695
        %v981 = vpow.pop %v980
        %v982 = vsel %vm975, %v981, 0.0
        %983 = vadd.xlane.f32.xlu0 %v982
        %v984 = vpop.xlane.xlu0 %983
        %v985 = vrcp.pop %v984
        %v986 = vmul.f32 %v981, %v985
        %v987 = vpack.c.bf16 %v986, %v986
        %v989 = vsel %vm975, %v987, 0
        %vm991 = vcmask 1043456
        %v993 = vsel %vm991, %v921, 0
        %995 = vmatprep.subr.bf16.mxu0 0
        %996 = vmatpush1.bf16.msra.mxu0 %v993
        %997 = vmatprep.subr.bf16.mxu0 0
        %998 = vmatpush1.bf16.msra.mxu0 0
        %999 = vmatprep.subr.bf16.mxu0 0
        %1000 = vmatpush1.bf16.msra.mxu0 0
        %1001 = vmatprep.subr.bf16.mxu0 0
        %1002 = vmatpush1.bf16.msra.mxu0 0
        %1003 = vmatprep.subr.bf16.mxu0 0
        %1004 = vmatpush1.bf16.msra.mxu0 0
        %1005 = vmatprep.subr.bf16.mxu0 0
        %1006 = vmatpush1.bf16.msra.mxu0 0
        %1007 = vmatprep.subr.bf16.mxu0 0
        %1008 = vmatpush1.bf16.msra.mxu0 0
        %1009 = vmatprep.subr.bf16.mxu0 0
        %1010 = vmatpush1.bf16.msra.mxu0 0
        %1011 = vmatprep.subr.bf16.mxu0 0
        %1012 = vmatpush1.bf16.msra.mxu0 0
        %1013 = vmatprep.subr.bf16.mxu0 0
        %1014 = vmatpush1.bf16.msra.mxu0 0
        %1015 = vmatprep.subr.bf16.mxu0 0
        %1016 = vmatpush1.bf16.msra.mxu0 0
        %1017 = vmatprep.subr.bf16.mxu0 0
        %1018 = vmatpush1.bf16.msra.mxu0 0
        %1019 = vmatprep.subr.bf16.mxu0 0
        %1020 = vmatpush1.bf16.msra.mxu0 0
        %1021 = vmatprep.subr.bf16.mxu0 0
        %1022 = vmatpush1.bf16.msra.mxu0 0
        %1023 = vmatprep.subr.bf16.mxu0 0
        %1024 = vmatpush1.bf16.msra.mxu0 0
        %1025 = vmatprep.subr.bf16.mxu0 0
        %1026 = vmatpush1.bf16.msra.mxu0 0
        %1027 = vmatprep.mubr.bf16.mxu0 0
        %1028 = vmatmul.mubr.bf16.gmra.mrb[0].mxu0 %v989
        %v1029 = vpop.f32.mrb[0].mxu0
        %v1030 = vadd.f32 0.0, %v1029
        %v1031 = vpop.f32.mrb[0].mxu0
        %v1032 = vpop.f32.mrb[0].mxu0
        %v1033 = vpop.f32.mrb[0].mxu0
        %1034 = vdwg.mxu0
        %1036 = vrot.lane.b32.xlu0 %v919, 96
        %v1037 = vpop.permute.xlu0 %1036
        %1039 = vrot.lane.b32.xlu0 %v920, 96
        %v1040 = vpop.permute.xlu0 %1039
        %v1042 = vsel %vm928, %v1037, 0
        %v1045 = vsel %vm928, %v1040, 0
        %1047 = vmatprep.subr.bf16.mxu0 0
        %1048 = vmatpush1.bf16.xpose.msra.mxu0 %v1045
        %1049 = vmatprep.subr.bf16.mxu0 0
        %1050 = vmatpush1.bf16.xpose.msra.mxu0 0
        %1051 = vmatprep.subr.bf16.mxu0 0
        %1052 = vmatpush1.bf16.xpose.msra.mxu0 0
        %1053 = vmatprep.subr.bf16.mxu0 0
        %1054 = vmatpush1.bf16.xpose.msra.mxu0 0
        %1055 = vmatprep.subr.bf16.mxu0 0
        %1056 = vmatpush1.bf16.xpose.msra.mxu0 0
        %1057 = vmatprep.subr.bf16.mxu0 0
        %1058 = vmatpush1.bf16.xpose.msra.mxu0 0
        %1059 = vmatprep.subr.bf16.mxu0 0
        %1060 = vmatpush1.bf16.xpose.msra.mxu0 0
        %1061 = vmatprep.subr.bf16.mxu0 0
        %1062 = vmatpush1.bf16.xpose.msra.mxu0 0
        %1063 = vmatprep.subr.bf16.mxu0 0
        %1064 = vmatpush1.bf16.xpose.msra.mxu0 0
        %1065 = vmatprep.subr.bf16.mxu0 0
        %1066 = vmatpush1.bf16.xpose.msra.mxu0 0
        %1067 = vmatprep.subr.bf16.mxu0 0
        %1068 = vmatpush1.bf16.xpose.msra.mxu0 0
        %1069 = vmatprep.subr.bf16.mxu0 0
        %1070 = vmatpush1.bf16.xpose.msra.mxu0 0
        %1071 = vmatprep.subr.bf16.mxu0 0
        %1072 = vmatpush1.bf16.xpose.msra.mxu0 0
        %1073 = vmatprep.subr.bf16.mxu0 0
        %1074 = vmatpush1.bf16.xpose.msra.mxu0 0
        %1075 = vmatprep.subr.bf16.mxu0 0
        %1076 = vmatpush1.bf16.xpose.msra.mxu0 0
        %1077 = vmatprep.subr.bf16.mxu0 0
        %1078 = vmatpush1.bf16.xpose.msra.mxu0 0
        %1079 = vmatprep.mubr.bf16.mxu0 0
        %1080 = vmatmul.mubr.bf16.gmra.mrb[0].mxu0 %v1042
        %v1081 = vpop.f32.mrb[0].mxu0
        %v1082 = vadd.f32 %v926, %v1081
        %v1083 = vpop.f32.mrb[0].mxu0
        %v1084 = vpop.f32.mrb[0].mxu0
        %v1085 = vpop.f32.mrb[0].mxu0
        %1086 = vdwg.mxu0
        %v1087 = vsel %vm975, %v1082, -inf
        %1088 = vmax.xlane.f32.xlu0 %v1087
        %v1089 = vpop.xlane.xlu0 %1088
        %v1090 = vsub.f32 %v1082, %v1089
        %v1091 = vmul.f32 %v1090, 1.442695
        %v1092 = vpow.pop %v1091
        %v1093 = vsel %vm975, %v1092, 0.0
        %1094 = vadd.xlane.f32.xlu0 %v1093
        %v1095 = vpop.xlane.xlu0 %1094
        %v1096 = vrcp.pop %v1095
        %v1097 = vmul.f32 %v1092, %v1096
        %v1098 = vpack.c.bf16 %v1097, %v1097
        %1100 = vrot.lane.b32.xlu0 %v921, 96
        %v1101 = vpop.permute.xlu0 %1100
        %v1103 = vsel %vm975, %v1098, 0
        %v1106 = vsel %vm991, %v1101, 0
        %1108 = vmatprep.subr.bf16.mxu0 0
        %1109 = vmatpush1.bf16.msra.mxu0 %v1106
        %1110 = vmatprep.subr.bf16.mxu0 0
        %1111 = vmatpush1.bf16.msra.mxu0 0
        %1112 = vmatprep.subr.bf16.mxu0 0
        %1113 = vmatpush1.bf16.msra.mxu0 0
        %1114 = vmatprep.subr.bf16.mxu0 0
        %1115 = vmatpush1.bf16.msra.mxu0 0
        %1116 = vmatprep.subr.bf16.mxu0 0
        %1117 = vmatpush1.bf16.msra.mxu0 0
        %1118 = vmatprep.subr.bf16.mxu0 0
        %1119 = vmatpush1.bf16.msra.mxu0 0
        %1120 = vmatprep.subr.bf16.mxu0 0
        %1121 = vmatpush1.bf16.msra.mxu0 0
        %1122 = vmatprep.subr.bf16.mxu0 0
        %1123 = vmatpush1.bf16.msra.mxu0 0
        %1124 = vmatprep.subr.bf16.mxu0 0
        %1125 = vmatpush1.bf16.msra.mxu0 0
        %1126 = vmatprep.subr.bf16.mxu0 0
        %1127 = vmatpush1.bf16.msra.mxu0 0
        %1128 = vmatprep.subr.bf16.mxu0 0
        %1129 = vmatpush1.bf16.msra.mxu0 0
        %1130 = vmatprep.subr.bf16.mxu0 0
        %1131 = vmatpush1.bf16.msra.mxu0 0
        %1132 = vmatprep.subr.bf16.mxu0 0
        %1133 = vmatpush1.bf16.msra.mxu0 0
        %1134 = vmatprep.subr.bf16.mxu0 0
        %1135 = vmatpush1.bf16.msra.mxu0 0
        %1136 = vmatprep.subr.bf16.mxu0 0
        %1137 = vmatpush1.bf16.msra.mxu0 0
        %1138 = vmatprep.subr.bf16.mxu0 0
        %1139 = vmatpush1.bf16.msra.mxu0 0
        %1140 = vmatprep.mubr.bf16.mxu0 0
        %1141 = vmatmul.mubr.bf16.gmra.mrb[0].mxu0 %v1103
        %v1142 = vpop.f32.mrb[0].mxu0
        %v1143 = vadd.f32 0.0, %v1142
        %v1144 = vpop.f32.mrb[0].mxu0
        %v1145 = vpop.f32.mrb[0].mxu0
        %v1146 = vpop.f32.mrb[0].mxu0
        %1147 = vdwg.mxu0
        %1148 = vrot.lane.b32.xlu0 %v919, 64
        %v1149 = vpop.permute.xlu0 %1148
        %1150 = vrot.lane.b32.xlu0 %v920, 64
        %v1151 = vpop.permute.xlu0 %1150
        %v1153 = vsel %vm928, %v1149, 0
        %v1156 = vsel %vm928, %v1151, 0
        %1158 = vmatprep.subr.bf16.mxu0 0
        %1159 = vmatpush1.bf16.xpose.msra.mxu0 %v1156
        %1160 = vmatprep.subr.bf16.mxu0 0
        %1161 = vmatpush1.bf16.xpose.msra.mxu0 0
        %1162 = vmatprep.subr.bf16.mxu0 0
        %1163 = vmatpush1.bf16.xpose.msra.mxu0 0
        %1164 = vmatprep.subr.bf16.mxu0 0
        %1165 = vmatpush1.bf16.xpose.msra.mxu0 0
        %1166 = vmatprep.subr.bf16.mxu0 0
        %1167 = vmatpush1.bf16.xpose.msra.mxu0 0
        %1168 = vmatprep.subr.bf16.mxu0 0
        %1169 = vmatpush1.bf16.xpose.msra.mxu0 0
        %1170 = vmatprep.subr.bf16.mxu0 0
        %1171 = vmatpush1.bf16.xpose.msra.mxu0 0
        %1172 = vmatprep.subr.bf16.mxu0 0
        %1173 = vmatpush1.bf16.xpose.msra.mxu0 0
        %1174 = vmatprep.subr.bf16.mxu0 0
        %1175 = vmatpush1.bf16.xpose.msra.mxu0 0
        %1176 = vmatprep.subr.bf16.mxu0 0
        %1177 = vmatpush1.bf16.xpose.msra.mxu0 0
        %1178 = vmatprep.subr.bf16.mxu0 0
        %1179 = vmatpush1.bf16.xpose.msra.mxu0 0
        %1180 = vmatprep.subr.bf16.mxu0 0
        %1181 = vmatpush1.bf16.xpose.msra.mxu0 0
        %1182 = vmatprep.subr.bf16.mxu0 0
        %1183 = vmatpush1.bf16.xpose.msra.mxu0 0
        %1184 = vmatprep.subr.bf16.mxu0 0
        %1185 = vmatpush1.bf16.xpose.msra.mxu0 0
        %1186 = vmatprep.subr.bf16.mxu0 0
        %1187 = vmatpush1.bf16.xpose.msra.mxu0 0
        %1188 = vmatprep.subr.bf16.mxu0 0
        %1189 = vmatpush1.bf16.xpose.msra.mxu0 0
        %1190 = vmatprep.mubr.bf16.mxu0 0
        %1191 = vmatmul.mubr.bf16.gmra.mrb[0].mxu0 %v1153
        %v1192 = vpop.f32.mrb[0].mxu0
        %v1193 = vadd.f32 %v926, %v1192
        %v1194 = vpop.f32.mrb[0].mxu0
        %v1195 = vpop.f32.mrb[0].mxu0
        %v1196 = vpop.f32.mrb[0].mxu0
        %1197 = vdwg.mxu0
        %v1198 = vsel %vm975, %v1193, -inf
        %1199 = vmax.xlane.f32.xlu0 %v1198
        %v1200 = vpop.xlane.xlu0 %1199
        %v1201 = vsub.f32 %v1193, %v1200
        %v1202 = vmul.f32 %v1201, 1.442695
        %v1203 = vpow.pop %v1202
        %v1204 = vsel %vm975, %v1203, 0.0
        %1205 = vadd.xlane.f32.xlu0 %v1204
        %v1206 = vpop.xlane.xlu0 %1205
        %v1207 = vrcp.pop %v1206
        %v1208 = vmul.f32 %v1203, %v1207
        %v1209 = vpack.c.bf16 %v1208, %v1208
        %1210 = vrot.lane.b32.xlu0 %v921, 64
        %v1211 = vpop.permute.xlu0 %1210
        %v1213 = vsel %vm975, %v1209, 0
        %v1216 = vsel %vm991, %v1211, 0
        %1218 = vmatprep.subr.bf16.mxu0 0
        %1219 = vmatpush1.bf16.msra.mxu0 %v1216
        %1220 = vmatprep.subr.bf16.mxu0 0
        %1221 = vmatpush1.bf16.msra.mxu0 0
        %1222 = vmatprep.subr.bf16.mxu0 0
        %1223 = vmatpush1.bf16.msra.mxu0 0
        %1224 = vmatprep.subr.bf16.mxu0 0
        %1225 = vmatpush1.bf16.msra.mxu0 0
        %1226 = vmatprep.subr.bf16.mxu0 0
        %1227 = vmatpush1.bf16.msra.mxu0 0
        %1228 = vmatprep.subr.bf16.mxu0 0
        %1229 = vmatpush1.bf16.msra.mxu0 0
        %1230 = vmatprep.subr.bf16.mxu0 0
        %1231 = vmatpush1.bf16.msra.mxu0 0
        %1232 = vmatprep.subr.bf16.mxu0 0
        %1233 = vmatpush1.bf16.msra.mxu0 0
        %1234 = vmatprep.subr.bf16.mxu0 0
        %1235 = vmatpush1.bf16.msra.mxu0 0
        %1236 = vmatprep.subr.bf16.mxu0 0
        %1237 = vmatpush1.bf16.msra.mxu0 0
        %1238 = vmatprep.subr.bf16.mxu0 0
        %1239 = vmatpush1.bf16.msra.mxu0 0
        %1240 = vmatprep.subr.bf16.mxu0 0
        %1241 = vmatpush1.bf16.msra.mxu0 0
        %1242 = vmatprep.subr.bf16.mxu0 0
        %1243 = vmatpush1.bf16.msra.mxu0 0
        %1244 = vmatprep.subr.bf16.mxu0 0
        %1245 = vmatpush1.bf16.msra.mxu0 0
        %1246 = vmatprep.subr.bf16.mxu0 0
        %1247 = vmatpush1.bf16.msra.mxu0 0
        %1248 = vmatprep.subr.bf16.mxu0 0
        %1249 = vmatpush1.bf16.msra.mxu0 0
        %1250 = vmatprep.mubr.bf16.mxu0 0
        %1251 = vmatmul.mubr.bf16.gmra.mrb[0].mxu0 %v1213
        %v1252 = vpop.f32.mrb[0].mxu0
        %v1253 = vadd.f32 0.0, %v1252
        %v1254 = vpop.f32.mrb[0].mxu0
        %v1255 = vpop.f32.mrb[0].mxu0
        %v1256 = vpop.f32.mrb[0].mxu0
        %1257 = vdwg.mxu0
        %1258 = vrot.lane.b32.xlu0 %v919, 32
        %v1259 = vpop.permute.xlu0 %1258
        %1260 = vrot.lane.b32.xlu0 %v920, 32
        %v1261 = vpop.permute.xlu0 %1260
        %v1263 = vsel %vm928, %v1259, 0
        %v1266 = vsel %vm928, %v1261, 0
        %1268 = vmatprep.subr.bf16.mxu0 0
        %1269 = vmatpush1.bf16.xpose.msra.mxu0 %v1266
        %1270 = vmatprep.subr.bf16.mxu0 0
        %1271 = vmatpush1.bf16.xpose.msra.mxu0 0
        %1272 = vmatprep.subr.bf16.mxu0 0
        %1273 = vmatpush1.bf16.xpose.msra.mxu0 0
        %1274 = vmatprep.subr.bf16.mxu0 0
        %1275 = vmatpush1.bf16.xpose.msra.mxu0 0
        %1276 = vmatprep.subr.bf16.mxu0 0
        %1277 = vmatpush1.bf16.xpose.msra.mxu0 0
        %1278 = vmatprep.subr.bf16.mxu0 0
        %1279 = vmatpush1.bf16.xpose.msra.mxu0 0
        %1280 = vmatprep.subr.bf16.mxu0 0
        %1281 = vmatpush1.bf16.xpose.msra.mxu0 0
        %1282 = vmatprep.subr.bf16.mxu0 0
        %1283 = vmatpush1.bf16.xpose.msra.mxu0 0
        %1284 = vmatprep.subr.bf16.mxu0 0
        %1285 = vmatpush1.bf16.xpose.msra.mxu0 0
        %1286 = vmatprep.subr.bf16.mxu0 0
        %1287 = vmatpush1.bf16.xpose.msra.mxu0 0
        %1288 = vmatprep.subr.bf16.mxu0 0
        %1289 = vmatpush1.bf16.xpose.msra.mxu0 0
        %1290 = vmatprep.subr.bf16.mxu0 0
        %1291 = vmatpush1.bf16.xpose.msra.mxu0 0
        %1292 = vmatprep.subr.bf16.mxu0 0
        %1293 = vmatpush1.bf16.xpose.msra.mxu0 0
        %1294 = vmatprep.subr.bf16.mxu0 0
        %1295 = vmatpush1.bf16.xpose.msra.mxu0 0
        %1296 = vmatprep.subr.bf16.mxu0 0
        %1297 = vmatpush1.bf16.xpose.msra.mxu0 0
        %1298 = vmatprep.subr.bf16.mxu0 0
        %1299 = vmatpush1.bf16.xpose.msra.mxu0 0
        %1300 = vmatprep.mubr.bf16.mxu0 0
        %1301 = vmatmul.mubr.bf16.gmra.mrb[0].mxu0 %v1263
        %v1302 = vpop.f32.mrb[0].mxu0
        %v1303 = vadd.f32 %v926, %v1302
        %v1304 = vpop.f32.mrb[0].mxu0
        %v1305 = vpop.f32.mrb[0].mxu0
        %v1306 = vpop.f32.mrb[0].mxu0
        %1307 = vdwg.mxu0
        %v1308 = vsel %vm975, %v1303, -inf
        %1309 = vmax.xlane.f32.xlu0 %v1308
        %v1310 = vpop.xlane.xlu0 %1309
        %v1311 = vsub.f32 %v1303, %v1310
        %v1312 = vmul.f32 %v1311, 1.442695
        %v1313 = vpow.pop %v1312
        %v1314 = vsel %vm975, %v1313, 0.0
        %1315 = vadd.xlane.f32.xlu0 %v1314
        %v1316 = vpop.xlane.xlu0 %1315
        %v1317 = vrcp.pop %v1316
        %v1318 = vmul.f32 %v1313, %v1317
        %v1319 = vpack.c.bf16 %v1318, %v1318
        %1320 = vrot.lane.b32.xlu0 %v921, 32
        %v1321 = vpop.permute.xlu0 %1320
        %v1323 = vsel %vm975, %v1319, 0
        %v1326 = vsel %vm991, %v1321, 0
        %1328 = vmatprep.subr.bf16.mxu0 0
        %1329 = vmatpush1.bf16.msra.mxu0 %v1326
        %1330 = vmatprep.subr.bf16.mxu0 0
        %1331 = vmatpush1.bf16.msra.mxu0 0
        %1332 = vmatprep.subr.bf16.mxu0 0
        %1333 = vmatpush1.bf16.msra.mxu0 0
        %1334 = vmatprep.subr.bf16.mxu0 0
        %1335 = vmatpush1.bf16.msra.mxu0 0
        %1336 = vmatprep.subr.bf16.mxu0 0
        %1337 = vmatpush1.bf16.msra.mxu0 0
        %1338 = vmatprep.subr.bf16.mxu0 0
        %1339 = vmatpush1.bf16.msra.mxu0 0
        %1340 = vmatprep.subr.bf16.mxu0 0
        %1341 = vmatpush1.bf16.msra.mxu0 0
        %1342 = vmatprep.subr.bf16.mxu0 0
        %1343 = vmatpush1.bf16.msra.mxu0 0
        %1344 = vmatprep.subr.bf16.mxu0 0
        %1345 = vmatpush1.bf16.msra.mxu0 0
        %1346 = vmatprep.subr.bf16.mxu0 0
        %1347 = vmatpush1.bf16.msra.mxu0 0
        %1348 = vmatprep.subr.bf16.mxu0 0
        %1349 = vmatpush1.bf16.msra.mxu0 0
        %1350 = vmatprep.subr.bf16.mxu0 0
        %1351 = vmatpush1.bf16.msra.mxu0 0
        %1352 = vmatprep.subr.bf16.mxu0 0
        %1353 = vmatpush1.bf16.msra.mxu0 0
        %1354 = vmatprep.subr.bf16.mxu0 0
        %1355 = vmatpush1.bf16.msra.mxu0 0
        %1356 = vmatprep.subr.bf16.mxu0 0
        %1357 = vmatpush1.bf16.msra.mxu0 0
        %1358 = vmatprep.subr.bf16.mxu0 0
        %1359 = vmatpush1.bf16.msra.mxu0 0
        %1360 = vmatprep.mubr.bf16.mxu0 0
        %1361 = vmatmul.mubr.bf16.gmra.mrb[0].mxu0 %v1323
        %v1362 = vpop.f32.mrb[0].mxu0
        %v1363 = vadd.f32 0.0, %v1362
        %v1364 = vpop.f32.mrb[0].mxu0
        %v1365 = vpop.f32.mrb[0].mxu0
        %v1366 = vpop.f32.mrb[0].mxu0
        %1367 = vdwg.mxu0
        %1369 = vrot.lane.b32.xlu0 %v1143, 32
        %v1370 = vpop.permute.xlu0 %1369
        %1373 = vrot.lane.b32.xlu0 %v1253, 64
        %v1374 = vpop.permute.xlu0 %1373
        %1377 = vrot.lane.b32.xlu0 %v1363, 96
        %v1378 = vpop.permute.xlu0 %1377
        %v1380 = vsel %vm928, %v1030, %v1370
        %vm1381 = vcmask 523264
        %v1382 = vsel %vm1381, %v1380, %v1374
        %vm1383 = vcmask 785408
        %v1384 = vsel %vm1383, %v1382, %v1378
        %v1385 = vpack.c.bf16 %v1384, %v1384
        %v1386 = vld [vmem:[#allocation8] sm:$0xf]
        %v1387 = vld [vmem:[#allocation8 + $0x4] sm:$0xf]
        %v1388 = vld [vmem:[#allocation8 + $0x8] sm:$0xf]
        %v1389 = vld [vmem:[#allocation8 + $0xc] sm:$0xf]
        %v1390 = vld [vmem:[#allocation8 + $0x10] sm:$0xf]
        %v1391 = vld [vmem:[#allocation8 + $0x14] sm:$0xf]
        %v1392 = vld [vmem:[#allocation8 + $0x18] sm:$0xf]
        %v1393 = vld [vmem:[#allocation8 + $0x1c] sm:$0xf]
        %v1394 = vld [vmem:[#allocation8 + $0x20] sm:$0xf]
        %v1395 = vld [vmem:[#allocation8 + $0x24] sm:$0xf]
        %v1396 = vld [vmem:[#allocation8 + $0x28] sm:$0xf]
        %v1397 = vld [vmem:[#allocation8 + $0x2c] sm:$0xf]
        %v1398 = vld [vmem:[#allocation8 + $0x30] sm:$0xf]
        %v1399 = vld [vmem:[#allocation8 + $0x34] sm:$0xf]
        %v1400 = vld [vmem:[#allocation8 + $0x38] sm:$0xf]
        %v1401 = vld [vmem:[#allocation8 + $0x3c] sm:$0xf]
        %v1402 = vld [vmem:[%s5] sm:$0x1]
        %v1404 = vlaneseq
        %v1405 = vshrl.u32 %v1404, 7
        %v1406 = vsub.s32 0, %v1405
        %v1407 = vrot.slane %v1402, %v1406
        %v1425 = vunpack.c.l.b16 %v1386
        %v1426 = vunpack.c.l.b16 %v1387
        %v1427 = vunpack.c.l.b16 %v1388
        %v1428 = vunpack.c.l.b16 %v1389
        %v1429 = vunpack.c.l.b16 %v1390
        %v1430 = vunpack.c.l.b16 %v1391
        %v1431 = vunpack.c.l.b16 %v1392
        %v1432 = vunpack.c.l.b16 %v1393
        %v1433 = vunpack.c.l.b16 %v1394
        %v1434 = vunpack.c.l.b16 %v1395
        %v1435 = vunpack.c.l.b16 %v1396
        %v1436 = vunpack.c.l.b16 %v1397
        %v1437 = vunpack.c.l.b16 %v1398
        %v1438 = vunpack.c.l.b16 %v1399
        %v1439 = vunpack.c.l.b16 %v1400
        %v1440 = vunpack.c.l.b16 %v1401
        %v1441 = vpack.c.b16 %v1426, %v1425
        %v1442 = vpack.c.b16 %v1428, %v1427
        %v1443 = vpack.c.b16 %v1430, %v1429
        %v1444 = vpack.c.b16 %v1432, %v1431
        %v1445 = vpack.c.b16 %v1434, %v1433
        %v1446 = vpack.c.b16 %v1436, %v1435
        %v1447 = vpack.c.b16 %v1438, %v1437
        %v1448 = vpack.c.b16 %v1440, %v1439
        %1457 = vmatprep.subr.bf16.mxu0 0
        %1458 = vmatpush1.bf16.msra.mxu0 %v1441
        %1459 = vmatprep.subr.bf16.mxu0 0
        %1460 = vmatpush1.bf16.msra.mxu0 %v1442
        %1461 = vmatprep.subr.bf16.mxu0 0
        %1462 = vmatpush1.bf16.msra.mxu0 %v1443
        %1463 = vmatprep.subr.bf16.mxu0 0
        %1464 = vmatpush1.bf16.msra.mxu0 %v1444
        %1465 = vmatprep.subr.bf16.mxu0 0
        %1466 = vmatpush1.bf16.msra.mxu0 %v1445
        %1467 = vmatprep.subr.bf16.mxu0 0
        %1468 = vmatpush1.bf16.msra.mxu0 %v1446
        %1469 = vmatprep.subr.bf16.mxu0 0
        %1470 = vmatpush1.bf16.msra.mxu0 %v1447
        %1471 = vmatprep.subr.bf16.mxu0 0
        %1472 = vmatpush1.bf16.msra.mxu0 %v1448
        %1473 = vmatprep.subr.bf16.mxu0 0
        %1474 = vmatpush1.bf16.msra.mxu0 0
        %1475 = vmatprep.subr.bf16.mxu0 0
        %1476 = vmatpush1.bf16.msra.mxu0 0
        %1477 = vmatprep.subr.bf16.mxu0 0
        %1478 = vmatpush1.bf16.msra.mxu0 0
        %1479 = vmatprep.subr.bf16.mxu0 0
        %1480 = vmatpush1.bf16.msra.mxu0 0
        %1481 = vmatprep.subr.bf16.mxu0 0
        %1482 = vmatpush1.bf16.msra.mxu0 0
        %1483 = vmatprep.subr.bf16.mxu0 0
        %1484 = vmatpush1.bf16.msra.mxu0 0
        %1485 = vmatprep.subr.bf16.mxu0 0
        %1486 = vmatpush1.bf16.msra.mxu0 0
        %1487 = vmatprep.subr.bf16.mxu0 0
        %1488 = vmatpush1.bf16.msra.mxu0 0
        %1489 = vmatprep.mubr.bf16.mxu0 0
        %1490 = vmatmul.mubr.bf16.gmra.mrb[0].mxu0 %v1385
        %v1491 = vpop.f32.mrb[0].mxu0
        %v1492 = vadd.f32 %v1407, %v1491
        %v1493 = vpop.f32.mrb[0].mxu0
        %v1494 = vpop.f32.mrb[0].mxu0
        %v1495 = vpop.f32.mrb[0].mxu0
        %1496 = vdwg.mxu0
        %v1497 = vadd.f32 %v1492, %v658
        %v1498 = vld [vmem:[%s6] sm:$0x1]
        %v1499 = vld [vmem:[%s7] sm:$0x1]
        %1500 = vadd.xlane.f32.xlu0 %v1497
        %v1501 = vpop.xlane.xlu0 %1500
        %v1502 = vmul.f32 %v1501, %v635
        %v1503 = vsub.f32 %v1497, %v1502
        %v1504 = vmul.f32 %v1503, %v1503
        %1505 = vadd.xlane.f32.xlu0 %v1504
        %v1506 = vpop.xlane.xlu0 %1505
        %v1507 = vmul.f32 %v1506, %v635
        %v1508 = vadd.f32 %v1507, 1e-12
        %v1509 = vrsqrt.pop %v1508
        %v1510 = vmul.f32 %v1503, %v1509
        %v1512 = vlaneseq
        %v1513 = vshrl.u32 %v1512, 7
        %v1514 = vsub.s32 0, %v1513
        %v1515 = vrot.slane %v1498, %v1514
        %v1517 = vmul.f32 %v1510, %v1515
        %v1519 = vlaneseq
        %v1520 = vshrl.u32 %v1519, 7
        %v1521 = vsub.s32 0, %v1520
        %v1522 = vrot.slane %v1499, %v1521
        %v1524 = vadd.f32 %v1517, %v1522
        %v1525 = vpack.c.bf16 %v1524, %v1524
        %v1526 = vld [vmem:[#allocation10] sm:$0xff]
        %v1527 = vld [vmem:[#allocation10 + $0x8] sm:$0xff]
        %v1528 = vld [vmem:[#allocation10 + $0x10] sm:$0xff]
        %v1529 = vld [vmem:[#allocation10 + $0x18] sm:$0xff]
        %v1530 = vld [vmem:[#allocation10 + $0x20] sm:$0xff]
        %v1531 = vld [vmem:[#allocation10 + $0x28] sm:$0xff]
        %v1532 = vld [vmem:[#allocation10 + $0x30] sm:$0xff]
        %v1533 = vld [vmem:[#allocation10 + $0x38] sm:$0xff]
        %v1534 = vld [vmem:[#allocation10 + $0x40] sm:$0xff]
        %v1535 = vld [vmem:[#allocation10 + $0x48] sm:$0xff]
        %v1536 = vld [vmem:[#allocation10 + $0x50] sm:$0xff]
        %v1537 = vld [vmem:[#allocation10 + $0x58] sm:$0xff]
        %v1538 = vld [vmem:[#allocation10 + $0x60] sm:$0xff]
        %v1539 = vld [vmem:[#allocation10 + $0x68] sm:$0xff]
        %v1540 = vld [vmem:[#allocation10 + $0x70] sm:$0xff]
        %v1541 = vld [vmem:[#allocation10 + $0x78] sm:$0xff]
        %v1542 = vld [vmem:[#allocation10 + $0x80] sm:$0xff]
        %v1543 = vld [vmem:[#allocation10 + $0x88] sm:$0xff]
        %v1544 = vld [vmem:[#allocation10 + $0x90] sm:$0xff]
        %v1545 = vld [vmem:[#allocation10 + $0x98] sm:$0xff]
        %v1546 = vld [vmem:[#allocation10 + $0xa0] sm:$0xff]
        %v1547 = vld [vmem:[#allocation10 + $0xa8] sm:$0xff]
        %v1548 = vld [vmem:[#allocation10 + $0xb0] sm:$0xff]
        %v1549 = vld [vmem:[#allocation10 + $0xb8] sm:$0xff]
        %v1550 = vld [vmem:[#allocation10 + $0xc0] sm:$0xff]
        %v1551 = vld [vmem:[#allocation10 + $0xc8] sm:$0xff]
        %v1552 = vld [vmem:[#allocation10 + $0xd0] sm:$0xff]
        %v1553 = vld [vmem:[#allocation10 + $0xd8] sm:$0xff]
        %v1554 = vld [vmem:[#allocation10 + $0xe0] sm:$0xff]
        %v1555 = vld [vmem:[#allocation10 + $0xe8] sm:$0xff]
        %v1556 = vld [vmem:[#allocation10 + $0xf0] sm:$0xff]
        %v1557 = vld [vmem:[#allocation10 + $0xf8] sm:$0xff]
        %v1558 = vld [vmem:[%s9] sm:$0xf]
        %v1560 = vlaneseq
        %v1561 = vshrl.u32 %v1560, 7
        %v1562 = vsub.s32 0, %v1561
        %v1563 = vrot.slane %v1558, %v1562
        %v1564 = vlaneseq
        %v1565 = vshrl.u32 %v1564, 7
        %v1566 = vsub.s32 1, %v1565
        %v1567 = vrot.slane %v1558, %v1566
        %v1568 = vlaneseq
        %v1569 = vshrl.u32 %v1568, 7
        %v1570 = vsub.s32 2, %v1569
        %v1571 = vrot.slane %v1558, %v1570
        %v1572 = vlaneseq
        %v1573 = vshrl.u32 %v1572, 7
        %v1574 = vsub.s32 3, %v1573
        %v1575 = vrot.slane %v1558, %v1574
        %v1612 = vunpack.c.l.b16 %v1526
        %v1613 = vunpack.c.h.b16 %v1526
        %v1614 = vunpack.c.l.b16 %v1527
        %v1615 = vunpack.c.h.b16 %v1527
        %v1616 = vunpack.c.l.b16 %v1528
        %v1617 = vunpack.c.h.b16 %v1528
        %v1618 = vunpack.c.l.b16 %v1529
        %v1619 = vunpack.c.h.b16 %v1529
        %v1620 = vunpack.c.l.b16 %v1530
        %v1621 = vunpack.c.h.b16 %v1530
        %v1622 = vunpack.c.l.b16 %v1531
        %v1623 = vunpack.c.h.b16 %v1531
        %v1624 = vunpack.c.l.b16 %v1532
        %v1625 = vunpack.c.h.b16 %v1532
        %v1626 = vunpack.c.l.b16 %v1533
        %v1627 = vunpack.c.h.b16 %v1533
        %v1628 = vunpack.c.l.b16 %v1534
        %v1629 = vunpack.c.h.b16 %v1534
        %v1630 = vunpack.c.l.b16 %v1535
        %v1631 = vunpack.c.h.b16 %v1535
        %v1632 = vunpack.c.l.b16 %v1536
        %v1633 = vunpack.c.h.b16 %v1536
        %v1634 = vunpack.c.l.b16 %v1537
        %v1635 = vunpack.c.h.b16 %v1537
        %v1636 = vunpack.c.l.b16 %v1538
        %v1637 = vunpack.c.h.b16 %v1538
        %v1638 = vunpack.c.l.b16 %v1539
        %v1639 = vunpack.c.h.b16 %v1539
        %v1640 = vunpack.c.l.b16 %v1540
        %v1641 = vunpack.c.h.b16 %v1540
        %v1642 = vunpack.c.l.b16 %v1541
        %v1643 = vunpack.c.h.b16 %v1541
        %v1644 = vunpack.c.l.b16 %v1542
        %v1645 = vunpack.c.h.b16 %v1542
        %v1646 = vunpack.c.l.b16 %v1543
        %v1647 = vunpack.c.h.b16 %v1543
        %v1648 = vunpack.c.l.b16 %v1544
        %v1649 = vunpack.c.h.b16 %v1544
        %v1650 = vunpack.c.l.b16 %v1545
        %v1651 = vunpack.c.h.b16 %v1545
        %v1652 = vunpack.c.l.b16 %v1546
        %v1653 = vunpack.c.h.b16 %v1546
        %v1654 = vunpack.c.l.b16 %v1547
        %v1655 = vunpack.c.h.b16 %v1547
        %v1656 = vunpack.c.l.b16 %v1548
        %v1657 = vunpack.c.h.b16 %v1548
        %v1658 = vunpack.c.l.b16 %v1549
        %v1659 = vunpack.c.h.b16 %v1549
        %v1660 = vunpack.c.l.b16 %v1550
        %v1661 = vunpack.c.h.b16 %v1550
        %v1662 = vunpack.c.l.b16 %v1551
        %v1663 = vunpack.c.h.b16 %v1551
        %v1664 = vunpack.c.l.b16 %v1552
        %v1665 = vunpack.c.h.b16 %v1552
        %v1666 = vunpack.c.l.b16 %v1553
        %v1667 = vunpack.c.h.b16 %v1553
        %v1668 = vunpack.c.l.b16 %v1554
        %v1669 = vunpack.c.h.b16 %v1554
        %v1670 = vunpack.c.l.b16 %v1555
        %v1671 = vunpack.c.h.b16 %v1555
        %v1672 = vunpack.c.l.b16 %v1556
        %v1673 = vunpack.c.h.b16 %v1556
        %v1674 = vunpack.c.l.b16 %v1557
        %v1675 = vunpack.c.h.b16 %v1557
        %v1676 = vpack.c.b16 %v1616, %v1612
        %v1677 = vpack.c.b16 %v1617, %v1613
        %v1678 = vpack.c.b16 %v1618, %v1614
        %v1679 = vpack.c.b16 %v1619, %v1615
        %v1680 = vpack.c.b16 %v1624, %v1620
        %v1681 = vpack.c.b16 %v1625, %v1621
        %v1682 = vpack.c.b16 %v1626, %v1622
        %v1683 = vpack.c.b16 %v1627, %v1623
        %v1684 = vpack.c.b16 %v1632, %v1628
        %v1685 = vpack.c.b16 %v1633, %v1629
        %v1686 = vpack.c.b16 %v1634, %v1630
        %v1687 = vpack.c.b16 %v1635, %v1631
        %v1688 = vpack.c.b16 %v1640, %v1636
        %v1689 = vpack.c.b16 %v1641, %v1637
        %v1690 = vpack.c.b16 %v1642, %v1638
        %v1691 = vpack.c.b16 %v1643, %v1639
        %v1692 = vpack.c.b16 %v1648, %v1644
        %v1693 = vpack.c.b16 %v1649, %v1645
        %v1694 = vpack.c.b16 %v1650, %v1646
        %v1695 = vpack.c.b16 %v1651, %v1647
        %v1696 = vpack.c.b16 %v1656, %v1652
        %v1697 = vpack.c.b16 %v1657, %v1653
        %v1698 = vpack.c.b16 %v1658, %v1654
        %v1699 = vpack.c.b16 %v1659, %v1655
        %v1700 = vpack.c.b16 %v1664, %v1660
        %v1701 = vpack.c.b16 %v1665, %v1661
        %v1702 = vpack.c.b16 %v1666, %v1662
        %v1703 = vpack.c.b16 %v1667, %v1663
        %v1704 = vpack.c.b16 %v1672, %v1668
        %v1705 = vpack.c.b16 %v1673, %v1669
        %v1706 = vpack.c.b16 %v1674, %v1670
        %v1707 = vpack.c.b16 %v1675, %v1671
        %1740 = vmatprep.subr.bf16.mxu0 %v1677
        %1741 = vmatpush1.bf16.msra.mxu0 %v1676
        %1742 = vmatprep.subr.bf16.mxu0 %v1681
        %1743 = vmatpush1.bf16.msra.mxu0 %v1680
        %1744 = vmatprep.subr.bf16.mxu0 %v1685
        %1745 = vmatpush1.bf16.msra.mxu0 %v1684
        %1746 = vmatprep.subr.bf16.mxu0 %v1689
        %1747 = vmatpush1.bf16.msra.mxu0 %v1688
        %1748 = vmatprep.subr.bf16.mxu0 %v1693
        %1749 = vmatpush1.bf16.msra.mxu0 %v1692
        %1750 = vmatprep.subr.bf16.mxu0 %v1697
        %1751 = vmatpush1.bf16.msra.mxu0 %v1696
        %1752 = vmatprep.subr.bf16.mxu0 %v1701
        %1753 = vmatpush1.bf16.msra.mxu0 %v1700
        %1754 = vmatprep.subr.bf16.mxu0 %v1705
        %1755 = vmatpush1.bf16.msra.mxu0 %v1704
        %1756 = vmatprep.subr.bf16.mxu0 0
        %1757 = vmatpush1.bf16.msra.mxu0 0
        %1758 = vmatprep.subr.bf16.mxu0 0
        %1759 = vmatpush1.bf16.msra.mxu0 0
        %1760 = vmatprep.subr.bf16.mxu0 0
        %1761 = vmatpush1.bf16.msra.mxu0 0
        %1762 = vmatprep.subr.bf16.mxu0 0
        %1763 = vmatpush1.bf16.msra.mxu0 0
        %1764 = vmatprep.subr.bf16.mxu0 0
        %1765 = vmatpush1.bf16.msra.mxu0 0
        %1766 = vmatprep.subr.bf16.mxu0 0
        %1767 = vmatpush1.bf16.msra.mxu0 0
        %1768 = vmatprep.subr.bf16.mxu0 0
        %1769 = vmatpush1.bf16.msra.mxu0 0
        %1770 = vmatprep.subr.bf16.mxu0 0
        %1771 = vmatpush1.bf16.msra.mxu0 0
        %1772 = vmatprep.mubr.bf16.mxu0 0
        %1773 = vmatmul.mubr.bf16.gmra.mrb[0].mxu0 %v1525
        %v1774 = vpop.f32.mrb[0].mxu0
        %v1775 = vadd.f32 %v1563, %v1774
        %v1776 = vpop.f32.mrb[0].mxu0
        %v1777 = vadd.f32 %v1567, %v1776
        %v1778 = vpop.f32.mrb[0].mxu0
        %v1779 = vpop.f32.mrb[0].mxu0
        %1780 = vdwg.mxu0
        %1781 = vmatprep.subr.bf16.mxu0 %v1679
        %1782 = vmatpush1.bf16.msra.mxu0 %v1678
        %1783 = vmatprep.subr.bf16.mxu0 %v1683
        %1784 = vmatpush1.bf16.msra.mxu0 %v1682
        %1785 = vmatprep.subr.bf16.mxu0 %v1687
        %1786 = vmatpush1.bf16.msra.mxu0 %v1686
        %1787 = vmatprep.subr.bf16.mxu0 %v1691
        %1788 = vmatpush1.bf16.msra.mxu0 %v1690
        %1789 = vmatprep.subr.bf16.mxu0 %v1695
        %1790 = vmatpush1.bf16.msra.mxu0 %v1694
        %1791 = vmatprep.subr.bf16.mxu0 %v1699
        %1792 = vmatpush1.bf16.msra.mxu0 %v1698
        %1793 = vmatprep.subr.bf16.mxu0 %v1703
        %1794 = vmatpush1.bf16.msra.mxu0 %v1702
        %1795 = vmatprep.subr.bf16.mxu0 %v1707
        %1796 = vmatpush1.bf16.msra.mxu0 %v1706
        %1797 = vmatprep.subr.bf16.mxu0 0
        %1798 = vmatpush1.bf16.msra.mxu0 0
        %1799 = vmatprep.subr.bf16.mxu0 0
        %1800 = vmatpush1.bf16.msra.mxu0 0
        %1801 = vmatprep.subr.bf16.mxu0 0
        %1802 = vmatpush1.bf16.msra.mxu0 0
        %1803 = vmatprep.subr.bf16.mxu0 0
        %1804 = vmatpush1.bf16.msra.mxu0 0
        %1805 = vmatprep.subr.bf16.mxu0 0
        %1806 = vmatpush1.bf16.msra.mxu0 0
        %1807 = vmatprep.subr.bf16.mxu0 0
        %1808 = vmatpush1.bf16.msra.mxu0 0
        %1809 = vmatprep.subr.bf16.mxu0 0
        %1810 = vmatpush1.bf16.msra.mxu0 0
        %1811 = vmatprep.subr.bf16.mxu0 0
        %1812 = vmatpush1.bf16.msra.mxu0 0
        %1813 = vmatprep.mubr.bf16.mxu0 0
        %1814 = vmatmul.mubr.bf16.gmra.mrb[0].mxu0 %v1525
        %v1815 = vpop.f32.mrb[0].mxu0
        %v1816 = vadd.f32 %v1571, %v1815
        %v1817 = vpop.f32.mrb[0].mxu0
        %v1818 = vadd.f32 %v1575, %v1817
        %v1819 = vpop.f32.mrb[0].mxu0
        %v1820 = vpop.f32.mrb[0].mxu0
        %1821 = vdwg.mxu0
        %v1822 = vmul.f32 %v1775, 0.5
        %v1823 = vmul.f32 %v1777, 0.5
        %v1824 = vmul.f32 %v1816, 0.5
        %v1825 = vmul.f32 %v1818, 0.5
        %v1826 = vmul.f32 %v1775, 0.044715
        %v1827 = vmul.f32 %v1777, 0.044715
        %v1828 = vmul.f32 %v1816, 0.044715
        %v1829 = vmul.f32 %v1818, 0.044715
        %v1830 = vmul.f32 %v1826, %v1775
        %v1831 = vmul.f32 %v1827, %v1777
        %v1832 = vmul.f32 %v1828, %v1816
        %v1833 = vmul.f32 %v1829, %v1818
        %v1834 = vmul.f32 %v1830, %v1775
        %v1835 = vmul.f32 %v1831, %v1777
        %v1836 = vmul.f32 %v1832, %v1816
        %v1837 = vmul.f32 %v1833, %v1818
        %v1838 = vadd.f32 %v1775, %v1834
        %v1839 = vadd.f32 %v1777, %v1835
        %v1840 = vadd.f32 %v1816, %v1836
        %v1841 = vadd.f32 %v1818, %v1837
        %v1842 = vmul.f32 %v1838, 0.7978846
        %v1843 = vmul.f32 %v1839, 0.7978846
        %v1844 = vmul.f32 %v1840, 0.7978846
        %v1845 = vmul.f32 %v1841, 0.7978846
        %v1846 = vtanh.pop %v1842
        %v1847 = vtanh.pop %v1843
        %v1848 = vtanh.pop %v1844
        %v1849 = vtanh.pop %v1845
        %v1850 = vadd.f32 %v1846, 1.0
        %v1851 = vadd.f32 %v1847, 1.0
        %v1852 = vadd.f32 %v1848, 1.0
        %v1853 = vadd.f32 %v1849, 1.0
        %v1854 = vmul.f32 %v1822, %v1850
        %v1855 = vmul.f32 %v1823, %v1851
        %v1856 = vmul.f32 %v1824, %v1852
        %v1857 = vmul.f32 %v1825, %v1853
        %v1858 = vpack.c.bf16 %v1854, %v1854
        %v1859 = vpack.c.bf16 %v1855, %v1855
        %v1860 = vpack.c.bf16 %v1856, %v1856
        %v1861 = vpack.c.bf16 %v1857, %v1857
        %v1862 = vld [vmem:[#allocation11] sm:$0xf]
        %v1863 = vld [vmem:[#allocation11 + $0x4] sm:$0xf]
        %v1864 = vld [vmem:[#allocation11 + $0x8] sm:$0xf]
        %v1865 = vld [vmem:[#allocation11 + $0xc] sm:$0xf]
        %v1866 = vld [vmem:[#allocation11 + $0x10] sm:$0xf]
        %v1867 = vld [vmem:[#allocation11 + $0x14] sm:$0xf]
        %v1868 = vld [vmem:[#allocation11 + $0x18] sm:$0xf]
        %v1869 = vld [vmem:[#allocation11 + $0x1c] sm:$0xf]
        %v1870 = vld [vmem:[#allocation11 + $0x20] sm:$0xf]
        %v1871 = vld [vmem:[#allocation11 + $0x24] sm:$0xf]
        %v1872 = vld [vmem:[#allocation11 + $0x28] sm:$0xf]
        %v1873 = vld [vmem:[#allocation11 + $0x2c] sm:$0xf]
        %v1874 = vld [vmem:[#allocation11 + $0x30] sm:$0xf]
        %v1875 = vld [vmem:[#allocation11 + $0x34] sm:$0xf]
        %v1876 = vld [vmem:[#allocation11 + $0x38] sm:$0xf]
        %v1877 = vld [vmem:[#allocation11 + $0x3c] sm:$0xf]
        %v1878 = vld [vmem:[#allocation11 + $0x40] sm:$0xf]
        %v1879 = vld [vmem:[#allocation11 + $0x44] sm:$0xf]
        %v1880 = vld [vmem:[#allocation11 + $0x48] sm:$0xf]
        %v1881 = vld [vmem:[#allocation11 + $0x4c] sm:$0xf]
        %v1882 = vld [vmem:[#allocation11 + $0x50] sm:$0xf]
        %v1883 = vld [vmem:[#allocation11 + $0x54] sm:$0xf]
        %v1884 = vld [vmem:[#allocation11 + $0x58] sm:$0xf]
        %v1885 = vld [vmem:[#allocation11 + $0x5c] sm:$0xf]
        %v1886 = vld [vmem:[#allocation11 + $0x60] sm:$0xf]
        %v1887 = vld [vmem:[#allocation11 + $0x64] sm:$0xf]
        %v1888 = vld [vmem:[#allocation11 + $0x68] sm:$0xf]
        %v1889 = vld [vmem:[#allocation11 + $0x6c] sm:$0xf]
        %v1890 = vld [vmem:[#allocation11 + $0x70] sm:$0xf]
        %v1891 = vld [vmem:[#allocation11 + $0x74] sm:$0xf]
        %v1892 = vld [vmem:[#allocation11 + $0x78] sm:$0xf]
        %v1893 = vld [vmem:[#allocation11 + $0x7c] sm:$0xf]
        %v1894 = vld [vmem:[#allocation11 + $0x80] sm:$0xf]
        %v1895 = vld [vmem:[#allocation11 + $0x84] sm:$0xf]
        %v1896 = vld [vmem:[#allocation11 + $0x88] sm:$0xf]
        %v1897 = vld [vmem:[#allocation11 + $0x8c] sm:$0xf]
        %v1898 = vld [vmem:[#allocation11 + $0x90] sm:$0xf]
        %v1899 = vld [vmem:[#allocation11 + $0x94] sm:$0xf]
        %v1900 = vld [vmem:[#allocation11 + $0x98] sm:$0xf]
        %v1901 = vld [vmem:[#allocation11 + $0x9c] sm:$0xf]
        %v1902 = vld [vmem:[#allocation11 + $0xa0] sm:$0xf]
        %v1903 = vld [vmem:[#allocation11 + $0xa4] sm:$0xf]
        %v1904 = vld [vmem:[#allocation11 + $0xa8] sm:$0xf]
        %v1905 = vld [vmem:[#allocation11 + $0xac] sm:$0xf]
        %v1906 = vld [vmem:[#allocation11 + $0xb0] sm:$0xf]
        %v1907 = vld [vmem:[#allocation11 + $0xb4] sm:$0xf]
        %v1908 = vld [vmem:[#allocation11 + $0xb8] sm:$0xf]
        %v1909 = vld [vmem:[#allocation11 + $0xbc] sm:$0xf]
        %v1910 = vld [vmem:[#allocation11 + $0xc0] sm:$0xf]
        %v1911 = vld [vmem:[#allocation11 + $0xc4] sm:$0xf]
        %v1912 = vld [vmem:[#allocation11 + $0xc8] sm:$0xf]
        %v1913 = vld [vmem:[#allocation11 + $0xcc] sm:$0xf]
        %v1914 = vld [vmem:[#allocation11 + $0xd0] sm:$0xf]
        %v1915 = vld [vmem:[#allocation11 + $0xd4] sm:$0xf]
        %v1916 = vld [vmem:[#allocation11 + $0xd8] sm:$0xf]
        %v1917 = vld [vmem:[#allocation11 + $0xdc] sm:$0xf]
        %v1918 = vld [vmem:[#allocation11 + $0xe0] sm:$0xf]
        %v1919 = vld [vmem:[#allocation11 + $0xe4] sm:$0xf]
        %v1920 = vld [vmem:[#allocation11 + $0xe8] sm:$0xf]
        %v1921 = vld [vmem:[#allocation11 + $0xec] sm:$0xf]
        %v1922 = vld [vmem:[#allocation11 + $0xf0] sm:$0xf]
        %v1923 = vld [vmem:[#allocation11 + $0xf4] sm:$0xf]
        %v1924 = vld [vmem:[#allocation11 + $0xf8] sm:$0xf]
        %v1925 = vld [vmem:[#allocation11 + $0xfc] sm:$0xf]
        %v1926 = vld [vmem:[%s11] sm:$0x1]
        %v1928 = vlaneseq
        %v1929 = vshrl.u32 %v1928, 7
        %v1930 = vsub.s32 0, %v1929
        %v1931 = vrot.slane %v1926, %v1930
        %v1997 = vunpack.c.l.b16 %v1862
        %v1998 = vunpack.c.l.b16 %v1863
        %v1999 = vunpack.c.l.b16 %v1864
        %v2000 = vunpack.c.l.b16 %v1865
        %v2001 = vunpack.c.l.b16 %v1866
        %v2002 = vunpack.c.l.b16 %v1867
        %v2003 = vunpack.c.l.b16 %v1868
        %v2004 = vunpack.c.l.b16 %v1869
        %v2005 = vunpack.c.l.b16 %v1870
        %v2006 = vunpack.c.l.b16 %v1871
        %v2007 = vunpack.c.l.b16 %v1872
        %v2008 = vunpack.c.l.b16 %v1873
        %v2009 = vunpack.c.l.b16 %v1874
        %v2010 = vunpack.c.l.b16 %v1875
        %v2011 = vunpack.c.l.b16 %v1876
        %v2012 = vunpack.c.l.b16 %v1877
        %v2013 = vunpack.c.l.b16 %v1878
        %v2014 = vunpack.c.l.b16 %v1879
        %v2015 = vunpack.c.l.b16 %v1880
        %v2016 = vunpack.c.l.b16 %v1881
        %v2017 = vunpack.c.l.b16 %v1882
        %v2018 = vunpack.c.l.b16 %v1883
        %v2019 = vunpack.c.l.b16 %v1884
        %v2020 = vunpack.c.l.b16 %v1885
        %v2021 = vunpack.c.l.b16 %v1886
        %v2022 = vunpack.c.l.b16 %v1887
        %v2023 = vunpack.c.l.b16 %v1888
        %v2024 = vunpack.c.l.b16 %v1889
        %v2025 = vunpack.c.l.b16 %v1890
        %v2026 = vunpack.c.l.b16 %v1891
        %v2027 = vunpack.c.l.b16 %v1892
        %v2028 = vunpack.c.l.b16 %v1893
        %v2029 = vunpack.c.l.b16 %v1894
        %v2030 = vunpack.c.l.b16 %v1895
        %v2031 = vunpack.c.l.b16 %v1896
        %v2032 = vunpack.c.l.b16 %v1897
        %v2033 = vunpack.c.l.b16 %v1898
        %v2034 = vunpack.c.l.b16 %v1899
        %v2035 = vunpack.c.l.b16 %v1900
        %v2036 = vunpack.c.l.b16 %v1901
        %v2037 = vunpack.c.l.b16 %v1902
        %v2038 = vunpack.c.l.b16 %v1903
        %v2039 = vunpack.c.l.b16 %v1904
        %v2040 = vunpack.c.l.b16 %v1905
        %v2041 = vunpack.c.l.b16 %v1906
        %v2042 = vunpack.c.l.b16 %v1907
        %v2043 = vunpack.c.l.b16 %v1908
        %v2044 = vunpack.c.l.b16 %v1909
        %v2045 = vunpack.c.l.b16 %v1910
        %v2046 = vunpack.c.l.b16 %v1911
        %v2047 = vunpack.c.l.b16 %v1912
        %v2048 = vunpack.c.l.b16 %v1913
        %v2049 = vunpack.c.l.b16 %v1914
        %v2050 = vunpack.c.l.b16 %v1915
        %v2051 = vunpack.c.l.b16 %v1916
        %v2052 = vunpack.c.l.b16 %v1917
        %v2053 = vunpack.c.l.b16 %v1918
        %v2054 = vunpack.c.l.b16 %v1919
        %v2055 = vunpack.c.l.b16 %v1920
        %v2056 = vunpack.c.l.b16 %v1921
        %v2057 = vunpack.c.l.b16 %v1922
        %v2058 = vunpack.c.l.b16 %v1923
        %v2059 = vunpack.c.l.b16 %v1924
        %v2060 = vunpack.c.l.b16 %v1925
        %v2061 = vpack.c.b16 %v1998, %v1997
        %v2062 = vpack.c.b16 %v2000, %v1999
        %v2063 = vpack.c.b16 %v2002, %v2001
        %v2064 = vpack.c.b16 %v2004, %v2003
        %v2065 = vpack.c.b16 %v2006, %v2005
        %v2066 = vpack.c.b16 %v2008, %v2007
        %v2067 = vpack.c.b16 %v2010, %v2009
        %v2068 = vpack.c.b16 %v2012, %v2011
        %v2069 = vpack.c.b16 %v2014, %v2013
        %v2070 = vpack.c.b16 %v2016, %v2015
        %v2071 = vpack.c.b16 %v2018, %v2017
        %v2072 = vpack.c.b16 %v2020, %v2019
        %v2073 = vpack.c.b16 %v2022, %v2021
        %v2074 = vpack.c.b16 %v2024, %v2023
        %v2075 = vpack.c.b16 %v2026, %v2025
        %v2076 = vpack.c.b16 %v2028, %v2027
        %v2077 = vpack.c.b16 %v2030, %v2029
        %v2078 = vpack.c.b16 %v2032, %v2031
        %v2079 = vpack.c.b16 %v2034, %v2033
        %v2080 = vpack.c.b16 %v2036, %v2035
        %v2081 = vpack.c.b16 %v2038, %v2037
        %v2082 = vpack.c.b16 %v2040, %v2039
        %v2083 = vpack.c.b16 %v2042, %v2041
        %v2084 = vpack.c.b16 %v2044, %v2043
        %v2085 = vpack.c.b16 %v2046, %v2045
        %v2086 = vpack.c.b16 %v2048, %v2047
        %v2087 = vpack.c.b16 %v2050, %v2049
        %v2088 = vpack.c.b16 %v2052, %v2051
        %v2089 = vpack.c.b16 %v2054, %v2053
        %v2090 = vpack.c.b16 %v2056, %v2055
        %v2091 = vpack.c.b16 %v2058, %v2057
        %v2092 = vpack.c.b16 %v2060, %v2059
        %2125 = vmatprep.subr.bf16.mxu0 0
        %2126 = vmatpush1.bf16.msra.mxu0 %v2061
        %2127 = vmatprep.subr.bf16.mxu0 0
        %2128 = vmatpush1.bf16.msra.mxu0 %v2062
        %2129 = vmatprep.subr.bf16.mxu0 0
        %2130 = vmatpush1.bf16.msra.mxu0 %v2063
        %2131 = vmatprep.subr.bf16.mxu0 0
        %2132 = vmatpush1.bf16.msra.mxu0 %v2064
        %2133 = vmatprep.subr.bf16.mxu0 0
        %2134 = vmatpush1.bf16.msra.mxu0 %v2065
        %2135 = vmatprep.subr.bf16.mxu0 0
        %2136 = vmatpush1.bf16.msra.mxu0 %v2066
        %2137 = vmatprep.subr.bf16.mxu0 0
        %2138 = vmatpush1.bf16.msra.mxu0 %v2067
        %2139 = vmatprep.subr.bf16.mxu0 0
        %2140 = vmatpush1.bf16.msra.mxu0 %v2068
        %2141 = vmatprep.subr.bf16.mxu0 0
        %2142 = vmatpush1.bf16.msra.mxu0 %v2069
        %2143 = vmatprep.subr.bf16.mxu0 0
        %2144 = vmatpush1.bf16.msra.mxu0 %v2070
        %2145 = vmatprep.subr.bf16.mxu0 0
        %2146 = vmatpush1.bf16.msra.mxu0 %v2071
        %2147 = vmatprep.subr.bf16.mxu0 0
        %2148 = vmatpush1.bf16.msra.mxu0 %v2072
        %2149 = vmatprep.subr.bf16.mxu0 0
        %2150 = vmatpush1.bf16.msra.mxu0 %v2073
        %2151 = vmatprep.subr.bf16.mxu0 0
        %2152 = vmatpush1.bf16.msra.mxu0 %v2074
        %2153 = vmatprep.subr.bf16.mxu0 0
        %2154 = vmatpush1.bf16.msra.mxu0 %v2075
        %2155 = vmatprep.subr.bf16.mxu0 0
        %2156 = vmatpush1.bf16.msra.mxu0 %v2076
        %2157 = vmatprep.mubr.bf16.mxu0 %v1859
        %2158 = vmatmul.mubr.bf16.gmra.mrb[0].mxu0 %v1858
        %v2159 = vpop.f32.mrb[0].mxu0
        %v2160 = vadd.f32 %v1931, %v2159
        %v2161 = vpop.f32.mrb[0].mxu0
        %v2162 = vpop.f32.mrb[0].mxu0
        %v2163 = vpop.f32.mrb[0].mxu0
        %2164 = vdwg.mxu0
        %2165 = vmatprep.subr.bf16.mxu0 0
        %2166 = vmatpush1.bf16.msra.mxu0 %v2077
        %2167 = vmatprep.subr.bf16.mxu0 0
        %2168 = vmatpush1.bf16.msra.mxu0 %v2078
        %2169 = vmatprep.subr.bf16.mxu0 0
        %2170 = vmatpush1.bf16.msra.mxu0 %v2079
        %2171 = vmatprep.subr.bf16.mxu0 0
        %2172 = vmatpush1.bf16.msra.mxu0 %v2080
        %2173 = vmatprep.subr.bf16.mxu0 0
        %2174 = vmatpush1.bf16.msra.mxu0 %v2081
        %2175 = vmatprep.subr.bf16.mxu0 0
        %2176 = vmatpush1.bf16.msra.mxu0 %v2082
        %2177 = vmatprep.subr.bf16.mxu0 0
        %2178 = vmatpush1.bf16.msra.mxu0 %v2083
        %2179 = vmatprep.subr.bf16.mxu0 0
        %2180 = vmatpush1.bf16.msra.mxu0 %v2084
        %2181 = vmatprep.subr.bf16.mxu0 0
        %2182 = vmatpush1.bf16.msra.mxu0 %v2085
        %2183 = vmatprep.subr.bf16.mxu0 0
        %2184 = vmatpush1.bf16.msra.mxu0 %v2086
        %2185 = vmatprep.subr.bf16.mxu0 0
        %2186 = vmatpush1.bf16.msra.mxu0 %v2087
        %2187 = vmatprep.subr.bf16.mxu0 0
        %2188 = vmatpush1.bf16.msra.mxu0 %v2088
        %2189 = vmatprep.subr.bf16.mxu0 0
        %2190 = vmatpush1.bf16.msra.mxu0 %v2089
        %2191 = vmatprep.subr.bf16.mxu0 0
        %2192 = vmatpush1.bf16.msra.mxu0 %v2090
        %2193 = vmatprep.subr.bf16.mxu0 0
        %2194 = vmatpush1.bf16.msra.mxu0 %v2091
        %2195 = vmatprep.subr.bf16.mxu0 0
        %2196 = vmatpush1.bf16.msra.mxu0 %v2092
        %2197 = vmatprep.mubr.bf16.mxu0 %v1861
        %2198 = vmatmul.mubr.bf16.gmra.mrb[0].mxu0 %v1860
        %v2199 = vpop.f32.mrb[0].mxu0
        %v2200 = vadd.f32 %v2160, %v2199
        %v2201 = vpop.f32.mrb[0].mxu0
        %v2202 = vpop.f32.mrb[0].mxu0
        %v2203 = vpop.f32.mrb[0].mxu0
        %2204 = vdwg.mxu0
        %v2205 = vadd.f32 %v2200, %v1524
        %v2206 = vld [vmem:[%s12] sm:$0x1]
        %v2207 = vld [vmem:[%s13] sm:$0x1]
        %2208 = vadd.xlane.f32.xlu0 %v2205
        %v2209 = vpop.xlane.xlu0 %2208
        %v2210 = vmul.f32 %v2209, %v635
        %v2211 = vsub.f32 %v2205, %v2210
        %v2212 = vmul.f32 %v2211, %v2211
        %2213 = vadd.xlane.f32.xlu0 %v2212
        %v2214 = vpop.xlane.xlu0 %2213
        %v2215 = vmul.f32 %v2214, %v635
        %v2216 = vadd.f32 %v2215, 1e-12
        %v2217 = vrsqrt.pop %v2216
        %v2218 = vmul.f32 %v2211, %v2217
        %v2220 = vlaneseq
        %v2221 = vshrl.u32 %v2220, 7
        %v2222 = vsub.s32 0, %v2221
        %v2223 = vrot.slane %v2206, %v2222
        %v2225 = vmul.f32 %v2218, %v2223
        %v2227 = vlaneseq
        %v2228 = vshrl.u32 %v2227, 7
        %v2229 = vsub.s32 0, %v2228
        %v2230 = vrot.slane %v2207, %v2229
        %v2232 = vadd.f32 %v2225, %v2230
        %2233 = vst [vmem:[%s628] sm:$0xff] %v2232
        %s2234 = sand.u32 %s392, 1
        %s2235 = scalar_lea.sflag [#allocation4], %s2234
        %s2236 = sand.u32 %s392, 1
        %s2237 = smul.addr %s2236, 8
        %s2238 = scalar_lea.vmem [#allocation13], %s2237
        // Predicated region
        $region109: #{tpu_custom_call.1} parent=83 // pred_check
          %p2239 = pneg %p402
        $region110: #{tpu_custom_call.1} parent=83 // pred_check_branch
          %2241 = sbr.rel (%p2239) target = $region112
        $region111: #{tpu_custom_call.1} parent=83 // pred_region
          %s2243 = ssub.s32 128, 128
          %2244 = vsyncadd %s2235, %s2243
          %s2245 = smul.addr %s38, 128
          %s2246 = scalar_lea.hbm %s16, %s2245
          %s2248 = sshll.u32 %s2238, 4
          %s2249 = int_to_ptr.vmem [resolvable:$true] %s2248
          %2251 = dma.vmem_to_hbm [thread:$0]  %s2249, 128, %s2246, %s2235
        $region112: #{tpu_custom_call.1} parent=83 // pred_fallthru
          _
      $region84: #{tpu_custom_call.1} parent=5 // pred_fallthru
        _
      %p2252 = scmp.le.s32.totalorder 2, %s33
      // Predicated region
      $region113: #{tpu_custom_call.1} parent=5 // pred_check
        %p2253 = pneg %p2252
      $region114: #{tpu_custom_call.1} parent=5 // pred_check_branch
        %2255 = sbr.rel (%p2253) target = $region116
      $region115: #{tpu_custom_call.1} parent=5 // pred_region
        %s2256 = ssub.s32 %s33, 2
        // Predicated region
        $region117: #{tpu_custom_call.1} parent=115 // pred_check
          %p2257 = pneg %p408
        $region118: #{tpu_custom_call.1} parent=115 // pred_check_branch
          %2259 = sbr.rel (%p2257) target = $region120
        $region119: #{tpu_custom_call.1} parent=115 // pred_region
          %s2260 = sand.u32 %s393, 1
          %s2261 = scalar_lea.sflag [#allocation4], %s2260
          %s2262 = sand.u32 %s393, 1
          %s2263 = smul.addr %s2262, 8
          %s2264 = scalar_lea.vmem [#allocation13], %s2263
          %2265 = dma.done %s2261, 128
        $region120: #{tpu_custom_call.1} parent=115 // pred_fallthru
          _
      $region116: #{tpu_custom_call.1} parent=5 // pred_fallthru
        _
    $region6: #{tpu_custom_call.1} parent=1 // loop_footer
      %s37 = sadd.s32 1, %s33
    $region7: #{tpu_custom_call.1} parent=1 // loop_footer_branch
      %32 = sbr.rel target = $region3
    $region8: #{tpu_custom_call.1} parent=1 // loop_exit
      _
    %2266 = vsyncpa [#allocation3], 1
    %s2267 = scalar_lea.sflag [#allocation3], 1
    %2268 = vsyncpa %s2267, 1
    %2269 = vsyncpa [#allocation6], 1
    %s2270 = scalar_lea.sflag [#allocation6], 1
    %2271 = vsyncpa %s2270, 1
    %2272 = vsyncpa [#allocation9], 1
    %2273 = vsyncpa [#allocation12], 1
    %2274 = vsyncpa [#allocation4], 1
    %s2275 = scalar_lea.sflag [#allocation4], 1
    %2276 = vsyncpa %s2275, 1

</llo_original>
